<compile_context>
chip_gen: v5e
topology: v5e:2x2
jax: 0.10.0
libtpu: 0.0.40
codegen_flags: <defaults>
</compile_context>

<pallas_src>
import functools

import jax
import jax.numpy as jnp
from jax.experimental import pallas as pl
from jax.experimental.pallas import tpu as pltpu


TILE_B_MAX = 1024     # max batch-tile rows (sweep 512-2048); 1024 amortizes the
                      # per-step overhead + MXU weight re-pushes while keeping
                      # VMEM use a few MiB and leaving >= 2 tiles for v7x's two
                      # TensorCores at realistic batch sizes.
LANE_PAD = 128        # fc4 output lanes padded to one full vreg lane width


def _supports_bf16_vpu():
    """bf16 VALU exists on v6e/v7x; v5e and older should keep f32 elementwise."""
    try:
        kind = jax.devices()[0].device_kind.lower()
    except Exception:
        return False
    return not any(tag in kind for tag in ("v2", "v3", "v4", "v5"))


_USE_BF16_ELEMENTWISE = _supports_bf16_vpu()


def _round_up(n, m):
    return ((n + m - 1) // m) * m


def _mlp_kernel(x_ref,
                w1_ref, b1_ref,
                w2_ref, b2_ref,
                w3_ref, b3_ref,
                w4_ref, b4_ref,
                o_ref,
                *, use_bf16_ew):
    def hidden(h_bf16, w_ref, b_ref):
        acc = jnp.dot(h_bf16, w_ref[...], preferred_element_type=jnp.float32)
        acc = acc + b_ref[...]                      # bias add in f32
        if use_bf16_ew:
            # bf16 ReLU: packed [16,128] vregs -> half the VALU ops (v6e/v7x),
            # and halves the VMEM footprint of the (tile_b, 256) intermediates.
            return jnp.maximum(acc.astype(jnp.bfloat16), 0.0)
        # v5e path: keep elementwise in f32, cast only at the MXU input.
        return jnp.maximum(acc, 0.0).astype(jnp.bfloat16)

    h = hidden(x_ref[...].astype(jnp.bfloat16), w1_ref, b1_ref)
    h = hidden(h, w2_ref, b2_ref)
    h = hidden(h, w3_ref, b3_ref)

    y = jnp.dot(h, w4_ref[...], preferred_element_type=jnp.float32) + b4_ref[...]
    # Epilogue x**2 + 1; lane-dense bf16 store (real columns sliced outside;
    # zero-padded fc4 columns deterministically produce 1.0 and are dropped).
    o_ref[...] = (y * y + 1.0).astype(o_ref.dtype)


@functools.partial(jax.jit, static_argnames=("out_dim",))
def ggd_risk_field_forward(x, params, out_dim=2):
    """x: (B, input_dim) f32.  params: dict from prepare_padded_params.
    Returns (B, out_dim) f32."""
    B, input_dim = x.shape
    w1, b1 = params["w1"], params["b1"]
    w2, b2 = params["w2"], params["b2"]
    w3, b3 = params["w3"], params["b3"]
    w4p, b4p = params["w4p"], params["b4p"]
    h1, h2, h3 = w1.shape[1], w2.shape[1], w3.shape[1]

    # Batch tiling: clamp the tile for small batches, cap at TILE_B_MAX.
    tile_b = min(TILE_B_MAX, _round_up(B, 256))
    Bp = _round_up(B, tile_b)
    n_tiles = Bp // tile_b
    x_pad = jnp.pad(x, ((0, Bp - B), (0, 0))) if Bp != B else x

    batch_map = lambda i: (i, 0)
    const_map = lambda i: (0, 0)     # weights/biases stay VMEM-resident

    flops = 2 * Bp * (input_dim * h1 + h1 * h2 + h2 * h3 + h3 * LANE_PAD)
    bytes_accessed = (
        x_pad.size * x_pad.dtype.itemsize
        + Bp * LANE_PAD * 2                                   # bf16 output
        + (w1.size + w2.size + w3.size + w4p.size) * 2        # bf16 weights
        + (b1.size + b2.size + b3.size + b4p.size) * 4)       # f32 biases

    kernel = functools.partial(_mlp_kernel, use_bf16_ew=_USE_BF16_ELEMENTWISE)

    out = pl.pallas_call(
        kernel,
        out_shape=jax.ShapeDtypeStruct((Bp, LANE_PAD), jnp.bfloat16),
        grid=(n_tiles,),
        in_specs=[
            pl.BlockSpec((tile_b, input_dim), batch_map),   # x tile
            pl.BlockSpec((input_dim, h1), const_map),       # w1
            pl.BlockSpec((1, h1), const_map),               # b1
            pl.BlockSpec((h1, h2), const_map),              # w2
            pl.BlockSpec((1, h2), const_map),               # b2
            pl.BlockSpec((h2, h3), const_map),              # w3
            pl.BlockSpec((1, h3), const_map),               # b3
            pl.BlockSpec((h3, LANE_PAD), const_map),        # w4 (lane-padded)
            pl.BlockSpec((1, LANE_PAD), const_map),         # b4 (lane-padded)
        ],
        out_specs=pl.BlockSpec((tile_b, LANE_PAD), batch_map),
        compiler_params=pltpu.CompilerParams(
            dimension_semantics=("parallel",),
            vmem_limit_bytes=32 << 20,     # comfortably within v7x's 64 MiB VMEM
        ),
        cost_estimate=pl.CostEstimate(
            flops=flops, transcendentals=0, bytes_accessed=bytes_accessed),
    )(x_pad, w1, b1, w2, b2, w3, b3, w4p, b4p)

    return out[:B, :out_dim].astype(jnp.float32)


def init_params(key, input_dim, output_dim=2,
                fc1_dim=256, fc2_dim=256, fc3_dim=256):
    """nn.Linear-style U(-1/sqrt(fan_in), 1/sqrt(fan_in)) init.
    Weights stored (in_features, out_features) in bf16 (MXU input dtype),
    biases (1, out_features) in f32."""
    dims = [(input_dim, fc1_dim), (fc1_dim, fc2_dim),
            (fc2_dim, fc3_dim), (fc3_dim, output_dim)]
    params = {}
    for i, (fan_in, fan_out) in enumerate(dims, start=1):
        key, kw, kb = jax.random.split(key, 3)
        bound = 1.0 / float(fan_in) ** 0.5
        w = jax.random.uniform(kw, (fan_in, fan_out), jnp.float32, -bound, bound)
        b = jax.random.uniform(kb, (1, fan_out), jnp.float32, -bound, bound)
        params[f"w{i}"] = w.astype(jnp.bfloat16)
        params[f"b{i}"] = b
    return params


def prepare_padded_params(params):
    """Hoisted once per parameter set (not per call): lane-pad fc4 to LANE_PAD
    output columns.  Padded columns are zero -> epilogue yields 1.0 there and
    they are sliced off in the forward."""
    out_dim = params["w4"].shape[1]
    assert out_dim <= LANE_PAD, f"out_dim={out_dim} exceeds LANE_PAD={LANE_PAD}"
    padded = {k: v for k, v in params.items() if k not in ("w4", "b4")}
    padded["w4p"] = jnp.pad(params["w4"], ((0, 0), (0, LANE_PAD - out_dim)))
    padded["b4p"] = jnp.pad(params["b4"], ((0, 0), (0, LANE_PAD - out_dim)))
    return padded, out_dim


def _reference_forward(x, params, out_dim):
    """Pure-JAX reference mirroring the kernel's arithmetic (bf16 MXU inputs,
    f32 accumulation, generation-dependent bf16/f32 elementwise, bf16 output)."""
    def hidden(h, w, b):
        acc = jnp.dot(h.astype(jnp.bfloat16), w,
                      preferred_element_type=jnp.float32) + b
        if _USE_BF16_ELEMENTWISE:
            return jnp.maximum(acc.astype(jnp.bfloat16), 0.0)
        return jnp.maximum(acc, 0.0).astype(jnp.bfloat16)

    h = hidden(x, params["w1"], params["b1"])
    h = hidden(h, params["w2"], params["b2"])
    h = hidden(h, params["w3"], params["b3"])
    w4 = params["w4p"][:, :out_dim]
    b4 = params["b4p"][:, :out_dim]
    y = jnp.dot(h, w4, preferred_element_type=jnp.float32) + b4
    return (y * y + 1.0).astype(jnp.bfloat16).astype(jnp.float32)


if __name__ == "__main__":
    key = jax.random.PRNGKey(0)
    k_x, k_p = jax.random.split(key)

    batch = 8
    input_dim = 16
    output_dim = 2

    x = jax.random.normal(k_x, (batch, input_dim), dtype=jnp.float32)
    raw_params = init_params(k_p, input_dim, output_dim)
    params, out_dim = prepare_padded_params(raw_params)

    out = ggd_risk_field_forward(x, params, out_dim=out_dim)
    out = jax.block_until_ready(out)

    ref = _reference_forward(x, params, out_dim)
    assert out.shape == (batch, output_dim), out.shape
    assert jnp.allclose(out, ref, atol=2e-3, rtol=2e-3), (
        "Pallas output mismatch vs reference")

    print("KERNEL_OK")
</pallas_src>

<mosaic_0001>
module attributes {stable_mosaic.version = 11 : i64} {
  func.func @_mlp_kernel(%arg0: i32, %arg1: memref<256x16xf32, #tpu.memory_space<vmem>>, %arg2: memref<16x256xbf16, #tpu.memory_space<vmem>>, %arg3: memref<1x256xf32, #tpu.memory_space<vmem>>, %arg4: memref<256x256xbf16, #tpu.memory_space<vmem>>, %arg5: memref<1x256xf32, #tpu.memory_space<vmem>>, %arg6: memref<256x256xbf16, #tpu.memory_space<vmem>>, %arg7: memref<1x256xf32, #tpu.memory_space<vmem>>, %arg8: memref<256x128xbf16, #tpu.memory_space<vmem>>, %arg9: memref<1x128xf32, #tpu.memory_space<vmem>>, %arg10: memref<256x128xbf16, #tpu.memory_space<vmem>>) attributes {dimension_semantics = [#tpu.dimension_semantics<parallel>], iteration_bounds = array<i64: 1>, scalar_prefetch = 0 : i64, scratch_operands = 0 : i64, tpu.core_type = #tpu.core_type<tc>, window_params = [{transform_indices = @transform_0, window_bounds = array<i64: 256, 16>}, {pipeline_mode = #tpu.pipeline_mode<synchronous>, transform_indices = @transform_1, window_bounds = array<i64: 16, 256>}, {pipeline_mode = #tpu.pipeline_mode<synchronous>, transform_indices = @transform_2, window_bounds = array<i64: 1, 256>}, {pipeline_mode = #tpu.pipeline_mode<synchronous>, transform_indices = @transform_3, window_bounds = array<i64: 256, 256>}, {pipeline_mode = #tpu.pipeline_mode<synchronous>, transform_indices = @transform_4, window_bounds = array<i64: 1, 256>}, {pipeline_mode = #tpu.pipeline_mode<synchronous>, transform_indices = @transform_5, window_bounds = array<i64: 256, 256>}, {pipeline_mode = #tpu.pipeline_mode<synchronous>, transform_indices = @transform_6, window_bounds = array<i64: 1, 256>}, {pipeline_mode = #tpu.pipeline_mode<synchronous>, transform_indices = @transform_7, window_bounds = array<i64: 256, 128>}, {pipeline_mode = #tpu.pipeline_mode<synchronous>, transform_indices = @transform_8, window_bounds = array<i64: 1, 128>}, {transform_indices = @transform_9, window_bounds = array<i64: 256, 128>}]} {
    %c0 = arith.constant 0 : index
    %c0_0 = arith.constant 0 : index
    %0 = vector.load %arg1[%c0, %c0_0] : memref<256x16xf32, #tpu.memory_space<vmem>>, vector<256x16xf32>
    %1 = arith.truncf %0 : vector<256x16xf32> to vector<256x16xbf16>
    %c0_1 = arith.constant 0 : index
    %c0_2 = arith.constant 0 : index
    %2 = vector.load %arg2[%c0_1, %c0_2] : memref<16x256xbf16, #tpu.memory_space<vmem>>, vector<16x256xbf16>
    %cst = arith.constant dense<0.000000e+00> : vector<256x256xf32>
    %3 = tpu.matmul %1, %2, %cst {dimension_numbers = #tpu.dot_dimension_numbers<[1], [0], [0], [1], [0, 0, 1, 1], [], []>} : vector<256x16xbf16>, vector<16x256xbf16>, vector<256x256xf32> -> vector<256x256xf32>
    %c0_3 = arith.constant 0 : index
    %c0_4 = arith.constant 0 : index
    %4 = vector.load %arg3[%c0_3, %c0_4] : memref<1x256xf32, #tpu.memory_space<vmem>>, vector<1x256xf32>
    %5 = vector.broadcast %4 : vector<1x256xf32> to vector<256x256xf32>
    %6 = arith.addf %3, %5 : vector<256x256xf32>
    %7 = arith.truncf %6 : vector<256x256xf32> to vector<256x256xbf16>
    %cst_5 = arith.constant 0.000000e+00 : bf16
    %8 = vector.broadcast %cst_5 : bf16 to vector<256x256xbf16>
    %9 = arith.maximumf %7, %8 : vector<256x256xbf16>
    %c0_6 = arith.constant 0 : index
    %c0_7 = arith.constant 0 : index
    %10 = vector.load %arg4[%c0_6, %c0_7] : memref<256x256xbf16, #tpu.memory_space<vmem>>, vector<256x256xbf16>
    %cst_8 = arith.constant dense<0.000000e+00> : vector<256x256xf32>
    %11 = tpu.matmul %9, %10, %cst_8 {dimension_numbers = #tpu.dot_dimension_numbers<[1], [0], [0], [1], [0, 0, 1, 1], [], []>} : vector<256x256xbf16>, vector<256x256xbf16>, vector<256x256xf32> -> vector<256x256xf32>
    %c0_9 = arith.constant 0 : index
    %c0_10 = arith.constant 0 : index
    %12 = vector.load %arg5[%c0_9, %c0_10] : memref<1x256xf32, #tpu.memory_space<vmem>>, vector<1x256xf32>
    %13 = vector.broadcast %12 : vector<1x256xf32> to vector<256x256xf32>
    %14 = arith.addf %11, %13 : vector<256x256xf32>
    %15 = arith.truncf %14 : vector<256x256xf32> to vector<256x256xbf16>
    %cst_11 = arith.constant 0.000000e+00 : bf16
    %16 = vector.broadcast %cst_11 : bf16 to vector<256x256xbf16>
    %17 = arith.maximumf %15, %16 : vector<256x256xbf16>
    %c0_12 = arith.constant 0 : index
    %c0_13 = arith.constant 0 : index
    %18 = vector.load %arg6[%c0_12, %c0_13] : memref<256x256xbf16, #tpu.memory_space<vmem>>, vector<256x256xbf16>
    %cst_14 = arith.constant dense<0.000000e+00> : vector<256x256xf32>
    %19 = tpu.matmul %17, %18, %cst_14 {dimension_numbers = #tpu.dot_dimension_numbers<[1], [0], [0], [1], [0, 0, 1, 1], [], []>} : vector<256x256xbf16>, vector<256x256xbf16>, vector<256x256xf32> -> vector<256x256xf32>
    %c0_15 = arith.constant 0 : index
    %c0_16 = arith.constant 0 : index
    %20 = vector.load %arg7[%c0_15, %c0_16] : memref<1x256xf32, #tpu.memory_space<vmem>>, vector<1x256xf32>
    %21 = vector.broadcast %20 : vector<1x256xf32> to vector<256x256xf32>
    %22 = arith.addf %19, %21 : vector<256x256xf32>
    %23 = arith.truncf %22 : vector<256x256xf32> to vector<256x256xbf16>
    %cst_17 = arith.constant 0.000000e+00 : bf16
    %24 = vector.broadcast %cst_17 : bf16 to vector<256x256xbf16>
    %25 = arith.maximumf %23, %24 : vector<256x256xbf16>
    %c0_18 = arith.constant 0 : index
    %c0_19 = arith.constant 0 : index
    %26 = vector.load %arg8[%c0_18, %c0_19] : memref<256x128xbf16, #tpu.memory_space<vmem>>, vector<256x128xbf16>
    %cst_20 = arith.constant dense<0.000000e+00> : vector<256x128xf32>
    %27 = tpu.matmul %25, %26, %cst_20 {dimension_numbers = #tpu.dot_dimension_numbers<[1], [0], [0], [1], [0, 0, 1, 1], [], []>} : vector<256x256xbf16>, vector<256x128xbf16>, vector<256x128xf32> -> vector<256x128xf32>
    %c0_21 = arith.constant 0 : index
    %c0_22 = arith.constant 0 : index
    %28 = vector.load %arg9[%c0_21, %c0_22] : memref<1x128xf32, #tpu.memory_space<vmem>>, vector<1x128xf32>
    %29 = vector.broadcast %28 : vector<1x128xf32> to vector<256x128xf32>
    %30 = arith.addf %27, %29 : vector<256x128xf32>
    %31 = arith.mulf %30, %30 : vector<256x128xf32>
    %cst_23 = arith.constant 1.000000e+00 : f32
    %32 = vector.broadcast %cst_23 : f32 to vector<256x128xf32>
    %33 = arith.addf %31, %32 : vector<256x128xf32>
    %34 = arith.truncf %33 : vector<256x128xf32> to vector<256x128xbf16>
    %c0_24 = arith.constant 0 : index
    %c0_25 = arith.constant 0 : index
    %35 = vector.load %arg10[%c0_24, %c0_25] : memref<256x128xbf16, #tpu.memory_space<vmem>>, vector<256x128xbf16>
    tpu.vector_store %arg10[%c0_24, %c0_25], %34 {strides = array<i32>} : memref<256x128xbf16, #tpu.memory_space<vmem>>, vector<256x128xbf16>,
    return
  }
  func.func @transform_0(%arg0: i32) -> (i32, i32) {
    %c0_i32 = arith.constant 0 : i32
    %c0_i32_0 = arith.constant 0 : i32
    return %arg0, %c0_i32 : i32, i32
  }
  func.func @transform_1(%arg0: i32) -> (i32, i32) {
    %c0_i32 = arith.constant 0 : i32
    %c0_i32_0 = arith.constant 0 : i32
    %c0_i32_1 = arith.constant 0 : i32
    return %c0_i32, %c0_i32_0 : i32, i32
  }
  func.func @transform_2(%arg0: i32) -> (i32, i32) {
    %c0_i32 = arith.constant 0 : i32
    %c0_i32_0 = arith.constant 0 : i32
    %c0_i32_1 = arith.constant 0 : i32
    return %c0_i32, %c0_i32_0 : i32, i32
  }
  func.func @transform_3(%arg0: i32) -> (i32, i32) {
    %c0_i32 = arith.constant 0 : i32
    %c0_i32_0 = arith.constant 0 : i32
    %c0_i32_1 = arith.constant 0 : i32
    return %c0_i32, %c0_i32_0 : i32, i32
  }
  func.func @transform_4(%arg0: i32) -> (i32, i32) {
    %c0_i32 = arith.constant 0 : i32
    %c0_i32_0 = arith.constant 0 : i32
    %c0_i32_1 = arith.constant 0 : i32
    return %c0_i32, %c0_i32_0 : i32, i32
  }
  func.func @transform_5(%arg0: i32) -> (i32, i32) {
    %c0_i32 = arith.constant 0 : i32
    %c0_i32_0 = arith.constant 0 : i32
    %c0_i32_1 = arith.constant 0 : i32
    return %c0_i32, %c0_i32_0 : i32, i32
  }
  func.func @transform_6(%arg0: i32) -> (i32, i32) {
    %c0_i32 = arith.constant 0 : i32
    %c0_i32_0 = arith.constant 0 : i32
    %c0_i32_1 = arith.constant 0 : i32
    return %c0_i32, %c0_i32_0 : i32, i32
  }
  func.func @transform_7(%arg0: i32) -> (i32, i32) {
    %c0_i32 = arith.constant 0 : i32
    %c0_i32_0 = arith.constant 0 : i32
    %c0_i32_1 = arith.constant 0 : i32
    return %c0_i32, %c0_i32_0 : i32, i32
  }
  func.func @transform_8(%arg0: i32) -> (i32, i32) {
    %c0_i32 = arith.constant 0 : i32
    %c0_i32_0 = arith.constant 0 : i32
    %c0_i32_1 = arith.constant 0 : i32
    return %c0_i32, %c0_i32_0 : i32, i32
  }
  func.func @transform_9(%arg0: i32) -> (i32, i32) {
    %c0_i32 = arith.constant 0 : i32
    %c0_i32_0 = arith.constant 0 : i32
    return %arg0, %c0_i32 : i32, i32
  }
}

</mosaic_0001>

<llo_original>
// kernel: ggd_risk_field_forward.1
$region0: #{ggd_risk_field_forward.1}
  #allocation0 [shape = 'u32[]', space=smem, size = 0x4, offset = 0x4, fixed_abs, tag = 'smem constant byte address 0x4 - core index']
  #allocation1 [shape = 'u32[72,128]{1,0:T(1,128)}', space=vmem, size = 0x9000, scoped, tag = 'internal scratch']
  %s0 = inlined_call_operand.vmem [shape: f32[256,16], index: 0, kind: input, shape index: {}]
  %s1 = inlined_call_operand.hbm [shape: bf16[16,256], index: 1, kind: input, shape index: {}]
  %s2 = inlined_call_operand.vmem [shape: f32[1,256], index: 2, kind: input, shape index: {}]
  %s3 = inlined_call_operand.vmem [shape: bf16[256,256], index: 3, kind: input, shape index: {}]
  %s4 = inlined_call_operand.vmem [shape: f32[1,256], index: 4, kind: input, shape index: {}]
  %s5 = inlined_call_operand.hbm [shape: bf16[256,256], index: 5, kind: input, shape index: {}]
  %s6 = inlined_call_operand.vmem [shape: f32[1,256], index: 6, kind: input, shape index: {}]
  %s7 = inlined_call_operand.hbm [shape: bf16[256,128], index: 7, kind: input, shape index: {}]
  %s8 = inlined_call_operand.vmem [shape: f32[1,128], index: 8, kind: input, shape index: {}]
  %s9 = inlined_call_operand.vmem [shape: bf16[256,128], index: 9, kind: output, shape index: {}]
  %s10 = sld [smem:[#allocation0]]
  $region58: #{ggd_risk_field_forward.1} parent=0
    _
  %s12 = ssub.s32 1, %s10
  %s13 = scalar_select 0, %s12, %s10
  $region1: #{ggd_risk_field_forward.1} parent=0
    #allocation2 [shape = 'u8[8192]{0}', space=vmem, size = 0x2000, scoped, tag = 'input window, operand 1, single buffered']
    #allocation3 [shape = 's32[1]{0}', space=sflag, size = 0x4, scoped, tag = 'scoped memory for ggd_risk_field_forward.1']
    #allocation4 [shape = 'u8[131072]{0}', space=vmem, size = 0x20000, scoped, tag = 'input window, operand 5, single buffered']
    #allocation5 [shape = 's32[1]{0}', space=sflag, size = 0x4, scoped, tag = 'scoped memory for ggd_risk_field_forward.1']
    #allocation6 [shape = 'u8[65536]{0}', space=vmem, size = 0x10000, scoped, tag = 'input window, operand 7, single buffered']
    %14 = vsyncpa [#allocation3], 0
    %15 = vsyncpa [#allocation5], 0
    // Predicated region
    $region2: #{ggd_risk_field_forward.1} parent=1 // pred_check
      _
    $region3: #{ggd_risk_field_forward.1} parent=1 // pred_check_branch
      %17 = sbr.rel (0) target = $region5
    $region4: #{ggd_risk_field_forward.1} parent=1 // pred_region
      _
    $region5: #{ggd_risk_field_forward.1} parent=1 // pred_fallthru
      _
    // Predicated region
    $region6: #{ggd_risk_field_forward.1} parent=1 // pred_check
      _
    $region7: #{ggd_risk_field_forward.1} parent=1 // pred_check_branch
      %19 = sbr.rel (0) target = $region9
    $region8: #{ggd_risk_field_forward.1} parent=1 // pred_region
      %21 = vsyncadd [#allocation3], 0
      %s22 = sshll.u32 %s1, 4
      %s23 = int_to_ptr.hbm [resolvable:$true] %s22
      %s24 = sshll.u32 [#allocation2], 4
      %s25 = int_to_ptr.vmem [resolvable:$true] %s24
      %30 = dma.hbm_to_vmem [thread:$0]  %s23, 256, %s25, [#allocation3], 128, 128, 8
    $region9: #{ggd_risk_field_forward.1} parent=1 // pred_fallthru
      _
    // Predicated region
    $region10: #{ggd_risk_field_forward.1} parent=1 // pred_check
      _
    $region11: #{ggd_risk_field_forward.1} parent=1 // pred_check_branch
      %32 = sbr.rel (0) target = $region13
    $region12: #{ggd_risk_field_forward.1} parent=1 // pred_region
      _
    $region13: #{ggd_risk_field_forward.1} parent=1 // pred_fallthru
      _
    // Predicated region
    $region14: #{ggd_risk_field_forward.1} parent=1 // pred_check
      _
    $region15: #{ggd_risk_field_forward.1} parent=1 // pred_check_branch
      %34 = sbr.rel (0) target = $region17
    $region16: #{ggd_risk_field_forward.1} parent=1 // pred_region
      _
    $region17: #{ggd_risk_field_forward.1} parent=1 // pred_fallthru
      _
    // Predicated region
    $region18: #{ggd_risk_field_forward.1} parent=1 // pred_check
      _
    $region19: #{ggd_risk_field_forward.1} parent=1 // pred_check_branch
      %36 = sbr.rel (0) target = $region21
    $region20: #{ggd_risk_field_forward.1} parent=1 // pred_region
      _
    $region21: #{ggd_risk_field_forward.1} parent=1 // pred_fallthru
      _
    // Predicated region
    $region22: #{ggd_risk_field_forward.1} parent=1 // pred_check
      _
    $region23: #{ggd_risk_field_forward.1} parent=1 // pred_check_branch
      %38 = sbr.rel (0) target = $region25
    $region24: #{ggd_risk_field_forward.1} parent=1 // pred_region
      %40 = vsyncadd [#allocation5], 0
      %s41 = sshll.u32 %s5, 4
      %s42 = int_to_ptr.hbm [resolvable:$true] %s41
      %s43 = sshll.u32 [#allocation4], 4
      %s44 = int_to_ptr.vmem [resolvable:$true] %s43
      %49 = dma.hbm_to_vmem [thread:$0]  %s42, 4096, %s44, [#allocation5], 128, 128, 8
    $region25: #{ggd_risk_field_forward.1} parent=1 // pred_fallthru
      _
    // Predicated region
    $region26: #{ggd_risk_field_forward.1} parent=1 // pred_check
      _
    $region27: #{ggd_risk_field_forward.1} parent=1 // pred_check_branch
      %51 = sbr.rel (0) target = $region29
    $region28: #{ggd_risk_field_forward.1} parent=1 // pred_region
      _
    $region29: #{ggd_risk_field_forward.1} parent=1 // pred_fallthru
      _
    // Predicated region
    $region30: #{ggd_risk_field_forward.1} parent=1 // pred_check
      _
    $region31: #{ggd_risk_field_forward.1} parent=1 // pred_check_branch
      %53 = sbr.rel (0) target = $region33
    $region32: #{ggd_risk_field_forward.1} parent=1 // pred_region
      %55 = vsyncadd [#allocation5], 0
      %s56 = sshll.u32 %s7, 4
      %s57 = int_to_ptr.hbm [resolvable:$true] %s56
      %s58 = sshll.u32 [#allocation6], 4
      %s59 = int_to_ptr.vmem [resolvable:$true] %s58
      %64 = dma.hbm_to_vmem [thread:$0]  %s57, 2048, %s59, [#allocation5], 64, 64, 4
    $region33: #{ggd_risk_field_forward.1} parent=1 // pred_fallthru
      _
    // Predicated region
    $region34: #{ggd_risk_field_forward.1} parent=1 // pred_check
      _
    $region35: #{ggd_risk_field_forward.1} parent=1 // pred_check_branch
      %66 = sbr.rel (0) target = $region37
    $region36: #{ggd_risk_field_forward.1} parent=1 // pred_region
      _
    $region37: #{ggd_risk_field_forward.1} parent=1 // pred_fallthru
      _
    // Predicated region
    $region38: #{ggd_risk_field_forward.1} parent=1 // pred_check
      _
    $region39: #{ggd_risk_field_forward.1} parent=1 // pred_check_branch
      %68 = sbr.rel (0) target = $region41
    $region40: #{ggd_risk_field_forward.1} parent=1 // pred_region
      %70 = dma.done [#allocation3], 256
    $region41: #{ggd_risk_field_forward.1} parent=1 // pred_fallthru
      _
    // Predicated region
    $region42: #{ggd_risk_field_forward.1} parent=1 // pred_check
      _
    $region43: #{ggd_risk_field_forward.1} parent=1 // pred_check_branch
      %72 = sbr.rel (0) target = $region45
    $region44: #{ggd_risk_field_forward.1} parent=1 // pred_region
      %74 = dma.done [#allocation5], 4096
    $region45: #{ggd_risk_field_forward.1} parent=1 // pred_fallthru
      _
    // Predicated region
    $region46: #{ggd_risk_field_forward.1} parent=1 // pred_check
      _
    $region47: #{ggd_risk_field_forward.1} parent=1 // pred_check_branch
      %76 = sbr.rel (0) target = $region49
    $region48: #{ggd_risk_field_forward.1} parent=1 // pred_region
      %78 = dma.done [#allocation5], 2048
    $region49: #{ggd_risk_field_forward.1} parent=1 // pred_fallthru
      _
    %v80 = vld [vmem:[%s0] sm:$0xff]
    %v81 = vld [vmem:[%s0 + $0x8] sm:$0xff]
    %v82 = vld [vmem:[%s0 + $0x10] sm:$0xff]
    %v83 = vld [vmem:[%s0 + $0x18] sm:$0xff]
    %v84 = vld [vmem:[%s0 + $0x20] sm:$0xff]
    %v85 = vld [vmem:[%s0 + $0x28] sm:$0xff]
    %v86 = vld [vmem:[%s0 + $0x30] sm:$0xff]
    %v87 = vld [vmem:[%s0 + $0x38] sm:$0xff]
    %v88 = vld [vmem:[%s0 + $0x40] sm:$0xff]
    %v89 = vld [vmem:[%s0 + $0x48] sm:$0xff]
    %v90 = vld [vmem:[%s0 + $0x50] sm:$0xff]
    %v91 = vld [vmem:[%s0 + $0x58] sm:$0xff]
    %v92 = vld [vmem:[%s0 + $0x60] sm:$0xff]
    %v93 = vld [vmem:[%s0 + $0x68] sm:$0xff]
    %v94 = vld [vmem:[%s0 + $0x70] sm:$0xff]
    %v95 = vld [vmem:[%s0 + $0x78] sm:$0xff]
    %v96 = vld [vmem:[%s0 + $0x80] sm:$0xff]
    %v97 = vld [vmem:[%s0 + $0x88] sm:$0xff]
    %v98 = vld [vmem:[%s0 + $0x90] sm:$0xff]
    %v99 = vld [vmem:[%s0 + $0x98] sm:$0xff]
    %v100 = vld [vmem:[%s0 + $0xa0] sm:$0xff]
    %v101 = vld [vmem:[%s0 + $0xa8] sm:$0xff]
    %v102 = vld [vmem:[%s0 + $0xb0] sm:$0xff]
    %v103 = vld [vmem:[%s0 + $0xb8] sm:$0xff]
    %v104 = vld [vmem:[%s0 + $0xc0] sm:$0xff]
    %v105 = vld [vmem:[%s0 + $0xc8] sm:$0xff]
    %v106 = vld [vmem:[%s0 + $0xd0] sm:$0xff]
    %v107 = vld [vmem:[%s0 + $0xd8] sm:$0xff]
    %v108 = vld [vmem:[%s0 + $0xe0] sm:$0xff]
    %v109 = vld [vmem:[%s0 + $0xe8] sm:$0xff]
    %v110 = vld [vmem:[%s0 + $0xf0] sm:$0xff]
    %v111 = vld [vmem:[%s0 + $0xf8] sm:$0xff]
    %v112 = vpack.c.bf16 %v81, %v80
    %v113 = vpack.c.bf16 %v83, %v82
    %v114 = vpack.c.bf16 %v85, %v84
    %v115 = vpack.c.bf16 %v87, %v86
    %v116 = vpack.c.bf16 %v89, %v88
    %v117 = vpack.c.bf16 %v91, %v90
    %v118 = vpack.c.bf16 %v93, %v92
    %v119 = vpack.c.bf16 %v95, %v94
    %v120 = vpack.c.bf16 %v97, %v96
    %v121 = vpack.c.bf16 %v99, %v98
    %v122 = vpack.c.bf16 %v101, %v100
    %v123 = vpack.c.bf16 %v103, %v102
    %v124 = vpack.c.bf16 %v105, %v104
    %v125 = vpack.c.bf16 %v107, %v106
    %v126 = vpack.c.bf16 %v109, %v108
    %v127 = vpack.c.bf16 %v111, %v110
    %v128 = vld [vmem:[#allocation2] sm:$0xff]
    %v129 = vld [vmem:[#allocation2 + $0x8] sm:$0xff]
    %v130 = vld [vmem:[%s2] sm:$0x3]
    %v132 = vperm.slane %v130, 0
    %v133 = vperm.slane %v130, 1
    %v138 = vunpack.c.l.b16 %v128
    %v139 = vunpack.c.h.b16 %v128
    %v140 = vunpack.c.l.b16 %v129
    %v141 = vunpack.c.h.b16 %v129
    %v142 = vpack.c.b16 %v140, %v138
    %v143 = vpack.c.b16 %v141, %v139
    %vm146 = vcmask 130048
    %v148 = vsel %vm146, %v112, 0
    %v151 = vsel %vm146, %v113, 0
    %v154 = vsel %vm146, %v114, 0
    %v157 = vsel %vm146, %v115, 0
    %v160 = vsel %vm146, %v116, 0
    %v163 = vsel %vm146, %v117, 0
    %v166 = vsel %vm146, %v118, 0
    %v169 = vsel %vm146, %v119, 0
    %v172 = vsel %vm146, %v120, 0
    %v175 = vsel %vm146, %v121, 0
    %v178 = vsel %vm146, %v122, 0
    %v181 = vsel %vm146, %v123, 0
    %v184 = vsel %vm146, %v124, 0
    %v187 = vsel %vm146, %v125, 0
    %v190 = vsel %vm146, %v126, 0
    %v193 = vsel %vm146, %v127, 0
    %195 = vmatpush.bf16.msra.mxu0 0
    %196 = vmatpush.bf16.msra.mxu0 0
    %197 = vmatpush.bf16.msra.mxu0 0
    %198 = vmatpush.bf16.msra.mxu0 0
    %199 = vmatpush.bf16.msra.mxu0 0
    %200 = vmatpush.bf16.msra.mxu0 0
    %201 = vmatpush.bf16.msra.mxu0 0
    %202 = vmatpush.bf16.msra.mxu0 %v142
    %203 = vmatmul.bf16.gmra.mxu0 %v148
    %v204 = vpop.f32.mrf.mxu0
    %v205 = vadd.f32 %v132, %v204
    %v206 = vpop.f32.mrf.mxu0
    %v207 = vadd.f32 %v132, %v206
    %208 = vmatmul.bf16.gmra.mxu0 %v151
    %v209 = vpop.f32.mrf.mxu0
    %v210 = vadd.f32 %v132, %v209
    %v211 = vpop.f32.mrf.mxu0
    %v212 = vadd.f32 %v132, %v211
    %213 = vmatmul.bf16.gmra.mxu0 %v154
    %v214 = vpop.f32.mrf.mxu0
    %v215 = vadd.f32 %v132, %v214
    %v216 = vpop.f32.mrf.mxu0
    %v217 = vadd.f32 %v132, %v216
    %218 = vmatmul.bf16.gmra.mxu0 %v157
    %v219 = vpop.f32.mrf.mxu0
    %v220 = vadd.f32 %v132, %v219
    %v221 = vpop.f32.mrf.mxu0
    %v222 = vadd.f32 %v132, %v221
    %223 = vmatmul.bf16.gmra.mxu0 %v160
    %v224 = vpop.f32.mrf.mxu0
    %v225 = vadd.f32 %v132, %v224
    %v226 = vpop.f32.mrf.mxu0
    %v227 = vadd.f32 %v132, %v226
    %228 = vmatmul.bf16.gmra.mxu0 %v163
    %v229 = vpop.f32.mrf.mxu0
    %v230 = vadd.f32 %v132, %v229
    %v231 = vpop.f32.mrf.mxu0
    %v232 = vadd.f32 %v132, %v231
    %233 = vmatmul.bf16.gmra.mxu0 %v166
    %v234 = vpop.f32.mrf.mxu0
    %v235 = vadd.f32 %v132, %v234
    %v236 = vpop.f32.mrf.mxu0
    %v237 = vadd.f32 %v132, %v236
    %238 = vmatmul.bf16.gmra.mxu0 %v169
    %v239 = vpop.f32.mrf.mxu0
    %v240 = vadd.f32 %v132, %v239
    %v241 = vpop.f32.mrf.mxu0
    %v242 = vadd.f32 %v132, %v241
    %243 = vmatmul.bf16.gmra.mxu0 %v172
    %v244 = vpop.f32.mrf.mxu0
    %v245 = vadd.f32 %v132, %v244
    %v246 = vpop.f32.mrf.mxu0
    %v247 = vadd.f32 %v132, %v246
    %248 = vmatmul.bf16.gmra.mxu0 %v175
    %v249 = vpop.f32.mrf.mxu0
    %v250 = vadd.f32 %v132, %v249
    %v251 = vpop.f32.mrf.mxu0
    %v252 = vadd.f32 %v132, %v251
    %253 = vmatmul.bf16.gmra.mxu0 %v178
    %v254 = vpop.f32.mrf.mxu0
    %v255 = vadd.f32 %v132, %v254
    %v256 = vpop.f32.mrf.mxu0
    %v257 = vadd.f32 %v132, %v256
    %258 = vmatmul.bf16.gmra.mxu0 %v181
    %v259 = vpop.f32.mrf.mxu0
    %v260 = vadd.f32 %v132, %v259
    %v261 = vpop.f32.mrf.mxu0
    %v262 = vadd.f32 %v132, %v261
    %263 = vmatmul.bf16.gmra.mxu0 %v184
    %v264 = vpop.f32.mrf.mxu0
    %v265 = vadd.f32 %v132, %v264
    %v266 = vpop.f32.mrf.mxu0
    %v267 = vadd.f32 %v132, %v266
    %268 = vmatmul.bf16.gmra.mxu0 %v187
    %v269 = vpop.f32.mrf.mxu0
    %v270 = vadd.f32 %v132, %v269
    %v271 = vpop.f32.mrf.mxu0
    %v272 = vadd.f32 %v132, %v271
    %273 = vmatmul.bf16.gmra.mxu0 %v190
    %v274 = vpop.f32.mrf.mxu0
    %v275 = vadd.f32 %v132, %v274
    %v276 = vpop.f32.mrf.mxu0
    %v277 = vadd.f32 %v132, %v276
    %278 = vmatmul.bf16.gmra.mxu0 %v193
    %v279 = vpop.f32.mrf.mxu0
    %v280 = vadd.f32 %v132, %v279
    %v281 = vpop.f32.mrf.mxu0
    %v282 = vadd.f32 %v132, %v281
    %283 = vdwg.mxu0
    %284 = vmatpush.bf16.msra.mxu0 0
    %285 = vmatpush.bf16.msra.mxu0 0
    %286 = vmatpush.bf16.msra.mxu0 0
    %287 = vmatpush.bf16.msra.mxu0 0
    %288 = vmatpush.bf16.msra.mxu0 0
    %289 = vmatpush.bf16.msra.mxu0 0
    %290 = vmatpush.bf16.msra.mxu0 0
    %291 = vmatpush.bf16.msra.mxu0 %v143
    %292 = vmatmul.bf16.gmra.mxu0 %v148
    %v293 = vpop.f32.mrf.mxu0
    %v294 = vadd.f32 %v133, %v293
    %v295 = vpop.f32.mrf.mxu0
    %v296 = vadd.f32 %v133, %v295
    %297 = vmatmul.bf16.gmra.mxu0 %v151
    %v298 = vpop.f32.mrf.mxu0
    %v299 = vadd.f32 %v133, %v298
    %v300 = vpop.f32.mrf.mxu0
    %v301 = vadd.f32 %v133, %v300
    %302 = vmatmul.bf16.gmra.mxu0 %v154
    %v303 = vpop.f32.mrf.mxu0
    %v304 = vadd.f32 %v133, %v303
    %v305 = vpop.f32.mrf.mxu0
    %v306 = vadd.f32 %v133, %v305
    %307 = vmatmul.bf16.gmra.mxu0 %v157
    %v308 = vpop.f32.mrf.mxu0
    %v309 = vadd.f32 %v133, %v308
    %v310 = vpop.f32.mrf.mxu0
    %v311 = vadd.f32 %v133, %v310
    %312 = vmatmul.bf16.gmra.mxu0 %v160
    %v313 = vpop.f32.mrf.mxu0
    %v314 = vadd.f32 %v133, %v313
    %v315 = vpop.f32.mrf.mxu0
    %v316 = vadd.f32 %v133, %v315
    %317 = vmatmul.bf16.gmra.mxu0 %v163
    %v318 = vpop.f32.mrf.mxu0
    %v319 = vadd.f32 %v133, %v318
    %v320 = vpop.f32.mrf.mxu0
    %v321 = vadd.f32 %v133, %v320
    %322 = vmatmul.bf16.gmra.mxu0 %v166
    %v323 = vpop.f32.mrf.mxu0
    %v324 = vadd.f32 %v133, %v323
    %v325 = vpop.f32.mrf.mxu0
    %v326 = vadd.f32 %v133, %v325
    %327 = vmatmul.bf16.gmra.mxu0 %v169
    %v328 = vpop.f32.mrf.mxu0
    %v329 = vadd.f32 %v133, %v328
    %v330 = vpop.f32.mrf.mxu0
    %v331 = vadd.f32 %v133, %v330
    %332 = vmatmul.bf16.gmra.mxu0 %v172
    %v333 = vpop.f32.mrf.mxu0
    %v334 = vadd.f32 %v133, %v333
    %v335 = vpop.f32.mrf.mxu0
    %v336 = vadd.f32 %v133, %v335
    %337 = vmatmul.bf16.gmra.mxu0 %v175
    %v338 = vpop.f32.mrf.mxu0
    %v339 = vadd.f32 %v133, %v338
    %v340 = vpop.f32.mrf.mxu0
    %v341 = vadd.f32 %v133, %v340
    %342 = vmatmul.bf16.gmra.mxu0 %v178
    %v343 = vpop.f32.mrf.mxu0
    %v344 = vadd.f32 %v133, %v343
    %v345 = vpop.f32.mrf.mxu0
    %v346 = vadd.f32 %v133, %v345
    %347 = vmatmul.bf16.gmra.mxu0 %v181
    %v348 = vpop.f32.mrf.mxu0
    %v349 = vadd.f32 %v133, %v348
    %v350 = vpop.f32.mrf.mxu0
    %v351 = vadd.f32 %v133, %v350
    %352 = vmatmul.bf16.gmra.mxu0 %v184
    %v353 = vpop.f32.mrf.mxu0
    %v354 = vadd.f32 %v133, %v353
    %v355 = vpop.f32.mrf.mxu0
    %v356 = vadd.f32 %v133, %v355
    %357 = vmatmul.bf16.gmra.mxu0 %v187
    %v358 = vpop.f32.mrf.mxu0
    %v359 = vadd.f32 %v133, %v358
    %v360 = vpop.f32.mrf.mxu0
    %v361 = vadd.f32 %v133, %v360
    %362 = vmatmul.bf16.gmra.mxu0 %v190
    %v363 = vpop.f32.mrf.mxu0
    %v364 = vadd.f32 %v133, %v363
    %v365 = vpop.f32.mrf.mxu0
    %v366 = vadd.f32 %v133, %v365
    %367 = vmatmul.bf16.gmra.mxu0 %v193
    %v368 = vpop.f32.mrf.mxu0
    %v369 = vadd.f32 %v133, %v368
    %v370 = vpop.f32.mrf.mxu0
    %v371 = vadd.f32 %v133, %v370
    %372 = vdwg.mxu0
    %v373 = vpack.c.bf16 %v294, %v205
    %v374 = vpack.c.bf16 %v296, %v207
    %v375 = vpack.c.bf16 %v299, %v210
    %v376 = vpack.c.bf16 %v301, %v212
    %v377 = vpack.c.bf16 %v304, %v215
    %v378 = vpack.c.bf16 %v306, %v217
    %v379 = vpack.c.bf16 %v309, %v220
    %v380 = vpack.c.bf16 %v311, %v222
    %v381 = vpack.c.bf16 %v314, %v225
    %v382 = vpack.c.bf16 %v316, %v227
    %v383 = vpack.c.bf16 %v319, %v230
    %v384 = vpack.c.bf16 %v321, %v232
    %v385 = vpack.c.bf16 %v324, %v235
    %v386 = vpack.c.bf16 %v326, %v237
    %v387 = vpack.c.bf16 %v329, %v240
    %v388 = vpack.c.bf16 %v331, %v242
    %v389 = vpack.c.bf16 %v334, %v245
    %v390 = vpack.c.bf16 %v336, %v247
    %v391 = vpack.c.bf16 %v339, %v250
    %v392 = vpack.c.bf16 %v341, %v252
    %v393 = vpack.c.bf16 %v344, %v255
    %v394 = vpack.c.bf16 %v346, %v257
    %v395 = vpack.c.bf16 %v349, %v260
    %v396 = vpack.c.bf16 %v351, %v262
    %v397 = vpack.c.bf16 %v354, %v265
    %v398 = vpack.c.bf16 %v356, %v267
    %v399 = vpack.c.bf16 %v359, %v270
    %v400 = vpack.c.bf16 %v361, %v272
    %v401 = vpack.c.bf16 %v364, %v275
    %v402 = vpack.c.bf16 %v366, %v277
    %v403 = vpack.c.bf16 %v369, %v280
    %v404 = vpack.c.bf16 %v371, %v282
    %v405 = vunpack.c.l.bf16 %v373
    %v406 = vunpack.c.h.bf16 %v373
    %v407 = vunpack.c.l.bf16 %v374
    %v408 = vunpack.c.h.bf16 %v374
    %v409 = vunpack.c.l.bf16 %v375
    %v410 = vunpack.c.h.bf16 %v375
    %v411 = vunpack.c.l.bf16 %v376
    %v412 = vunpack.c.h.bf16 %v376
    %v413 = vunpack.c.l.bf16 %v377
    %v414 = vunpack.c.h.bf16 %v377
    %v415 = vunpack.c.l.bf16 %v378
    %v416 = vunpack.c.h.bf16 %v378
    %v417 = vunpack.c.l.bf16 %v379
    %v418 = vunpack.c.h.bf16 %v379
    %v419 = vunpack.c.l.bf16 %v380
    %v420 = vunpack.c.h.bf16 %v380
    %v421 = vunpack.c.l.bf16 %v381
    %v422 = vunpack.c.h.bf16 %v381
    %v423 = vunpack.c.l.bf16 %v382
    %v424 = vunpack.c.h.bf16 %v382
    %v425 = vunpack.c.l.bf16 %v383
    %v426 = vunpack.c.h.bf16 %v383
    %v427 = vunpack.c.l.bf16 %v384
    %v428 = vunpack.c.h.bf16 %v384
    %v429 = vunpack.c.l.bf16 %v385
    %v430 = vunpack.c.h.bf16 %v385
    %v431 = vunpack.c.l.bf16 %v386
    %v432 = vunpack.c.h.bf16 %v386
    %v433 = vunpack.c.l.bf16 %v387
    %v434 = vunpack.c.h.bf16 %v387
    %v435 = vunpack.c.l.bf16 %v388
    %v436 = vunpack.c.h.bf16 %v388
    %v437 = vunpack.c.l.bf16 %v389
    %v438 = vunpack.c.h.bf16 %v389
    %v439 = vunpack.c.l.bf16 %v390
    %v440 = vunpack.c.h.bf16 %v390
    %v441 = vunpack.c.l.bf16 %v391
    %v442 = vunpack.c.h.bf16 %v391
    %v443 = vunpack.c.l.bf16 %v392
    %v444 = vunpack.c.h.bf16 %v392
    %v445 = vunpack.c.l.bf16 %v393
    %v446 = vunpack.c.h.bf16 %v393
    %v447 = vunpack.c.l.bf16 %v394
    %v448 = vunpack.c.h.bf16 %v394
    %v449 = vunpack.c.l.bf16 %v395
    %v450 = vunpack.c.h.bf16 %v395
    %v451 = vunpack.c.l.bf16 %v396
    %v452 = vunpack.c.h.bf16 %v396
    %v453 = vunpack.c.l.bf16 %v397
    %v454 = vunpack.c.h.bf16 %v397
    %v455 = vunpack.c.l.bf16 %v398
    %v456 = vunpack.c.h.bf16 %v398
    %v457 = vunpack.c.l.bf16 %v399
    %v458 = vunpack.c.h.bf16 %v399
    %v459 = vunpack.c.l.bf16 %v400
    %v460 = vunpack.c.h.bf16 %v400
    %v461 = vunpack.c.l.bf16 %v401
    %v462 = vunpack.c.h.bf16 %v401
    %v463 = vunpack.c.l.bf16 %v402
    %v464 = vunpack.c.h.bf16 %v402
    %v465 = vunpack.c.l.bf16 %v403
    %v466 = vunpack.c.h.bf16 %v403
    %v467 = vunpack.c.l.bf16 %v404
    %v468 = vunpack.c.h.bf16 %v404
    %v469 = vmax.f32 %v405, 0.0
    %v470 = vmax.f32 %v406, 0.0
    %v471 = vmax.f32 %v407, 0.0
    %v472 = vmax.f32 %v408, 0.0
    %v473 = vmax.f32 %v409, 0.0
    %v474 = vmax.f32 %v410, 0.0
    %v475 = vmax.f32 %v411, 0.0
    %v476 = vmax.f32 %v412, 0.0
    %v477 = vmax.f32 %v413, 0.0
    %v478 = vmax.f32 %v414, 0.0
    %v479 = vmax.f32 %v415, 0.0
    %v480 = vmax.f32 %v416, 0.0
    %v481 = vmax.f32 %v417, 0.0
    %v482 = vmax.f32 %v418, 0.0
    %v483 = vmax.f32 %v419, 0.0
    %v484 = vmax.f32 %v420, 0.0
    %v485 = vmax.f32 %v421, 0.0
    %v486 = vmax.f32 %v422, 0.0
    %v487 = vmax.f32 %v423, 0.0
    %v488 = vmax.f32 %v424, 0.0
    %v489 = vmax.f32 %v425, 0.0
    %v490 = vmax.f32 %v426, 0.0
    %v491 = vmax.f32 %v427, 0.0
    %v492 = vmax.f32 %v428, 0.0
    %v493 = vmax.f32 %v429, 0.0
    %v494 = vmax.f32 %v430, 0.0
    %v495 = vmax.f32 %v431, 0.0
    %v496 = vmax.f32 %v432, 0.0
    %v497 = vmax.f32 %v433, 0.0
    %v498 = vmax.f32 %v434, 0.0
    %v499 = vmax.f32 %v435, 0.0
    %v500 = vmax.f32 %v436, 0.0
    %v501 = vmax.f32 %v437, 0.0
    %v502 = vmax.f32 %v438, 0.0
    %v503 = vmax.f32 %v439, 0.0
    %v504 = vmax.f32 %v440, 0.0
    %v505 = vmax.f32 %v441, 0.0
    %v506 = vmax.f32 %v442, 0.0
    %v507 = vmax.f32 %v443, 0.0
    %v508 = vmax.f32 %v444, 0.0
    %v509 = vmax.f32 %v445, 0.0
    %v510 = vmax.f32 %v446, 0.0
    %v511 = vmax.f32 %v447, 0.0
    %v512 = vmax.f32 %v448, 0.0
    %v513 = vmax.f32 %v449, 0.0
    %v514 = vmax.f32 %v450, 0.0
    %v515 = vmax.f32 %v451, 0.0
    %v516 = vmax.f32 %v452, 0.0
    %v517 = vmax.f32 %v453, 0.0
    %v518 = vmax.f32 %v454, 0.0
    %v519 = vmax.f32 %v455, 0.0
    %v520 = vmax.f32 %v456, 0.0
    %v521 = vmax.f32 %v457, 0.0
    %v522 = vmax.f32 %v458, 0.0
    %v523 = vmax.f32 %v459, 0.0
    %v524 = vmax.f32 %v460, 0.0
    %v525 = vmax.f32 %v461, 0.0
    %v526 = vmax.f32 %v462, 0.0
    %v527 = vmax.f32 %v463, 0.0
    %v528 = vmax.f32 %v464, 0.0
    %v529 = vmax.f32 %v465, 0.0
    %v530 = vmax.f32 %v466, 0.0
    %v531 = vmax.f32 %v467, 0.0
    %v532 = vmax.f32 %v468, 0.0
    %v533 = vpack.c.bf16 %v471, %v469
    %v534 = vpack.c.bf16 %v472, %v470
    %v535 = vpack.c.bf16 %v475, %v473
    %v536 = vpack.c.bf16 %v476, %v474
    %v537 = vpack.c.bf16 %v479, %v477
    %v538 = vpack.c.bf16 %v480, %v478
    %v539 = vpack.c.bf16 %v483, %v481
    %v540 = vpack.c.bf16 %v484, %v482
    %v541 = vpack.c.bf16 %v487, %v485
    %v542 = vpack.c.bf16 %v488, %v486
    %v543 = vpack.c.bf16 %v491, %v489
    %v544 = vpack.c.bf16 %v492, %v490
    %v545 = vpack.c.bf16 %v495, %v493
    %v546 = vpack.c.bf16 %v496, %v494
    %v547 = vpack.c.bf16 %v499, %v497
    %v548 = vpack.c.bf16 %v500, %v498
    %v549 = vpack.c.bf16 %v503, %v501
    %v550 = vpack.c.bf16 %v504, %v502
    %v551 = vpack.c.bf16 %v507, %v505
    %v552 = vpack.c.bf16 %v508, %v506
    %v553 = vpack.c.bf16 %v511, %v509
    %v554 = vpack.c.bf16 %v512, %v510
    %v555 = vpack.c.bf16 %v515, %v513
    %v556 = vpack.c.bf16 %v516, %v514
    %v557 = vpack.c.bf16 %v519, %v517
    %v558 = vpack.c.bf16 %v520, %v518
    %v559 = vpack.c.bf16 %v523, %v521
    %v560 = vpack.c.bf16 %v524, %v522
    %v561 = vpack.c.bf16 %v527, %v525
    %v562 = vpack.c.bf16 %v528, %v526
    %v563 = vpack.c.bf16 %v531, %v529
    %v564 = vpack.c.bf16 %v532, %v530
    %v565 = vld [vmem:[%s3] sm:$0xff]
    %v566 = vld [vmem:[%s3 + $0x8] sm:$0xff]
    %v567 = vld [vmem:[%s3 + $0x10] sm:$0xff]
    %v568 = vld [vmem:[%s3 + $0x18] sm:$0xff]
    %v569 = vld [vmem:[%s3 + $0x20] sm:$0xff]
    %v570 = vld [vmem:[%s3 + $0x28] sm:$0xff]
    %v571 = vld [vmem:[%s3 + $0x30] sm:$0xff]
    %v572 = vld [vmem:[%s3 + $0x38] sm:$0xff]
    %v573 = vld [vmem:[%s3 + $0x40] sm:$0xff]
    %v574 = vld [vmem:[%s3 + $0x48] sm:$0xff]
    %v575 = vld [vmem:[%s3 + $0x50] sm:$0xff]
    %v576 = vld [vmem:[%s3 + $0x58] sm:$0xff]
    %v577 = vld [vmem:[%s3 + $0x60] sm:$0xff]
    %v578 = vld [vmem:[%s3 + $0x68] sm:$0xff]
    %v579 = vld [vmem:[%s3 + $0x70] sm:$0xff]
    %v580 = vld [vmem:[%s3 + $0x78] sm:$0xff]
    %v581 = vld [vmem:[%s3 + $0x80] sm:$0xff]
    %v582 = vld [vmem:[%s3 + $0x88] sm:$0xff]
    %v583 = vld [vmem:[%s3 + $0x90] sm:$0xff]
    %v584 = vld [vmem:[%s3 + $0x98] sm:$0xff]
    %v585 = vld [vmem:[%s3 + $0xa0] sm:$0xff]
    %v586 = vld [vmem:[%s3 + $0xa8] sm:$0xff]
    %v587 = vld [vmem:[%s3 + $0xb0] sm:$0xff]
    %v588 = vld [vmem:[%s3 + $0xb8] sm:$0xff]
    %v589 = vld [vmem:[%s3 + $0xc0] sm:$0xff]
    %v590 = vld [vmem:[%s3 + $0xc8] sm:$0xff]
    %v591 = vld [vmem:[%s3 + $0xd0] sm:$0xff]
    %v592 = vld [vmem:[%s3 + $0xd8] sm:$0xff]
    %v593 = vld [vmem:[%s3 + $0xe0] sm:$0xff]
    %v594 = vld [vmem:[%s3 + $0xe8] sm:$0xff]
    %v595 = vld [vmem:[%s3 + $0xf0] sm:$0xff]
    %v596 = vld [vmem:[%s3 + $0xf8] sm:$0xff]
    %v597 = vld [vmem:[%s4] sm:$0x3]
    %v599 = vperm.slane %v597, 0
    %v600 = vperm.slane %v597, 1
    %v635 = vunpack.c.l.b16 %v565
    %v636 = vunpack.c.h.b16 %v565
    %v637 = vunpack.c.l.b16 %v566
    %v638 = vunpack.c.h.b16 %v566
    %v639 = vunpack.c.l.b16 %v567
    %v640 = vunpack.c.h.b16 %v567
    %v641 = vunpack.c.l.b16 %v568
    %v642 = vunpack.c.h.b16 %v568
    %v643 = vunpack.c.l.b16 %v569
    %v644 = vunpack.c.h.b16 %v569
    %v645 = vunpack.c.l.b16 %v570
    %v646 = vunpack.c.h.b16 %v570
    %v647 = vunpack.c.l.b16 %v571
    %v648 = vunpack.c.h.b16 %v571
    %v649 = vunpack.c.l.b16 %v572
    %v650 = vunpack.c.h.b16 %v572
    %v651 = vunpack.c.l.b16 %v573
    %v652 = vunpack.c.h.b16 %v573
    %v653 = vunpack.c.l.b16 %v574
    %v654 = vunpack.c.h.b16 %v574
    %v655 = vunpack.c.l.b16 %v575
    %v656 = vunpack.c.h.b16 %v575
    %v657 = vunpack.c.l.b16 %v576
    %v658 = vunpack.c.h.b16 %v576
    %v659 = vunpack.c.l.b16 %v577
    %v660 = vunpack.c.h.b16 %v577
    %v661 = vunpack.c.l.b16 %v578
    %v662 = vunpack.c.h.b16 %v578
    %v663 = vunpack.c.l.b16 %v579
    %v664 = vunpack.c.h.b16 %v579
    %v665 = vunpack.c.l.b16 %v580
    %v666 = vunpack.c.h.b16 %v580
    %v667 = vunpack.c.l.b16 %v581
    %v668 = vunpack.c.h.b16 %v581
    %v669 = vunpack.c.l.b16 %v582
    %v670 = vunpack.c.h.b16 %v582
    %v671 = vunpack.c.l.b16 %v583
    %v672 = vunpack.c.h.b16 %v583
    %v673 = vunpack.c.l.b16 %v584
    %v674 = vunpack.c.h.b16 %v584
    %v675 = vunpack.c.l.b16 %v585
    %v676 = vunpack.c.h.b16 %v585
    %v677 = vunpack.c.l.b16 %v586
    %v678 = vunpack.c.h.b16 %v586
    %v679 = vunpack.c.l.b16 %v587
    %v680 = vunpack.c.h.b16 %v587
    %v681 = vunpack.c.l.b16 %v588
    %v682 = vunpack.c.h.b16 %v588
    %v683 = vunpack.c.l.b16 %v589
    %v684 = vunpack.c.h.b16 %v589
    %v685 = vunpack.c.l.b16 %v590
    %v686 = vunpack.c.h.b16 %v590
    %v687 = vunpack.c.l.b16 %v591
    %v688 = vunpack.c.h.b16 %v591
    %v689 = vunpack.c.l.b16 %v592
    %v690 = vunpack.c.h.b16 %v592
    %v691 = vunpack.c.l.b16 %v593
    %v692 = vunpack.c.h.b16 %v593
    %v693 = vunpack.c.l.b16 %v594
    %v694 = vunpack.c.h.b16 %v594
    %v695 = vunpack.c.l.b16 %v595
    %v696 = vunpack.c.h.b16 %v595
    %v697 = vunpack.c.l.b16 %v596
    %v698 = vunpack.c.h.b16 %v596
    %v699 = vpack.c.b16 %v637, %v635
    %v700 = vpack.c.b16 %v638, %v636
    %v701 = vpack.c.b16 %v641, %v639
    %v702 = vpack.c.b16 %v642, %v640
    %v703 = vpack.c.b16 %v645, %v643
    %v704 = vpack.c.b16 %v646, %v644
    %v705 = vpack.c.b16 %v649, %v647
    %v706 = vpack.c.b16 %v650, %v648
    %v707 = vpack.c.b16 %v653, %v651
    %v708 = vpack.c.b16 %v654, %v652
    %v709 = vpack.c.b16 %v657, %v655
    %v710 = vpack.c.b16 %v658, %v656
    %v711 = vpack.c.b16 %v661, %v659
    %v712 = vpack.c.b16 %v662, %v660
    %v713 = vpack.c.b16 %v665, %v663
    %v714 = vpack.c.b16 %v666, %v664
    %v715 = vpack.c.b16 %v669, %v667
    %v716 = vpack.c.b16 %v670, %v668
    %v717 = vpack.c.b16 %v673, %v671
    %v718 = vpack.c.b16 %v674, %v672
    %v719 = vpack.c.b16 %v677, %v675
    %v720 = vpack.c.b16 %v678, %v676
    %v721 = vpack.c.b16 %v681, %v679
    %v722 = vpack.c.b16 %v682, %v680
    %v723 = vpack.c.b16 %v685, %v683
    %v724 = vpack.c.b16 %v686, %v684
    %v725 = vpack.c.b16 %v689, %v687
    %v726 = vpack.c.b16 %v690, %v688
    %v727 = vpack.c.b16 %v693, %v691
    %v728 = vpack.c.b16 %v694, %v692
    %v729 = vpack.c.b16 %v697, %v695
    %v730 = vpack.c.b16 %v698, %v696
    %763 = vmatpush.bf16.msra.mxu0 %v713
    %764 = vmatpush.bf16.msra.mxu0 %v711
    %765 = vmatpush.bf16.msra.mxu0 %v709
    %766 = vmatpush.bf16.msra.mxu0 %v707
    %767 = vmatpush.bf16.msra.mxu0 %v705
    %768 = vmatpush.bf16.msra.mxu0 %v703
    %769 = vmatpush.bf16.msra.mxu0 %v701
    %770 = vmatpush.bf16.msra.mxu0 %v699
    %771 = vmatmul.bf16.gmra.mxu0 %v533
    %v772 = vpop.f32.mrf.mxu0
    %v773 = vadd.f32 %v599, %v772
    %v774 = vpop.f32.mrf.mxu0
    %v775 = vadd.f32 %v599, %v774
    %776 = vmatmul.bf16.gmra.mxu0 %v535
    %v777 = vpop.f32.mrf.mxu0
    %v778 = vadd.f32 %v599, %v777
    %v779 = vpop.f32.mrf.mxu0
    %v780 = vadd.f32 %v599, %v779
    %781 = vmatmul.bf16.gmra.mxu0 %v537
    %v782 = vpop.f32.mrf.mxu0
    %v783 = vadd.f32 %v599, %v782
    %v784 = vpop.f32.mrf.mxu0
    %v785 = vadd.f32 %v599, %v784
    %786 = vmatmul.bf16.gmra.mxu0 %v539
    %v787 = vpop.f32.mrf.mxu0
    %v788 = vadd.f32 %v599, %v787
    %v789 = vpop.f32.mrf.mxu0
    %v790 = vadd.f32 %v599, %v789
    %791 = vmatmul.bf16.gmra.mxu0 %v541
    %v792 = vpop.f32.mrf.mxu0
    %v793 = vadd.f32 %v599, %v792
    %v794 = vpop.f32.mrf.mxu0
    %v795 = vadd.f32 %v599, %v794
    %796 = vmatmul.bf16.gmra.mxu0 %v543
    %v797 = vpop.f32.mrf.mxu0
    %v798 = vadd.f32 %v599, %v797
    %v799 = vpop.f32.mrf.mxu0
    %v800 = vadd.f32 %v599, %v799
    %801 = vmatmul.bf16.gmra.mxu0 %v545
    %v802 = vpop.f32.mrf.mxu0
    %v803 = vadd.f32 %v599, %v802
    %v804 = vpop.f32.mrf.mxu0
    %v805 = vadd.f32 %v599, %v804
    %806 = vmatmul.bf16.gmra.mxu0 %v547
    %v807 = vpop.f32.mrf.mxu0
    %v808 = vadd.f32 %v599, %v807
    %v809 = vpop.f32.mrf.mxu0
    %v810 = vadd.f32 %v599, %v809
    %811 = vmatmul.bf16.gmra.mxu0 %v549
    %v812 = vpop.f32.mrf.mxu0
    %v813 = vadd.f32 %v599, %v812
    %v814 = vpop.f32.mrf.mxu0
    %v815 = vadd.f32 %v599, %v814
    %816 = vmatmul.bf16.gmra.mxu0 %v551
    %v817 = vpop.f32.mrf.mxu0
    %v818 = vadd.f32 %v599, %v817
    %v819 = vpop.f32.mrf.mxu0
    %v820 = vadd.f32 %v599, %v819
    %821 = vmatmul.bf16.gmra.mxu0 %v553
    %v822 = vpop.f32.mrf.mxu0
    %v823 = vadd.f32 %v599, %v822
    %v824 = vpop.f32.mrf.mxu0
    %v825 = vadd.f32 %v599, %v824
    %826 = vmatmul.bf16.gmra.mxu0 %v555
    %v827 = vpop.f32.mrf.mxu0
    %v828 = vadd.f32 %v599, %v827
    %v829 = vpop.f32.mrf.mxu0
    %v830 = vadd.f32 %v599, %v829
    %831 = vmatmul.bf16.gmra.mxu0 %v557
    %v832 = vpop.f32.mrf.mxu0
    %v833 = vadd.f32 %v599, %v832
    %v834 = vpop.f32.mrf.mxu0
    %v835 = vadd.f32 %v599, %v834
    %836 = vmatmul.bf16.gmra.mxu0 %v559
    %v837 = vpop.f32.mrf.mxu0
    %v838 = vadd.f32 %v599, %v837
    %v839 = vpop.f32.mrf.mxu0
    %v840 = vadd.f32 %v599, %v839
    %841 = vmatmul.bf16.gmra.mxu0 %v561
    %v842 = vpop.f32.mrf.mxu0
    %v843 = vadd.f32 %v599, %v842
    %v844 = vpop.f32.mrf.mxu0
    %v845 = vadd.f32 %v599, %v844
    %846 = vmatmul.bf16.gmra.mxu0 %v563
    %v847 = vpop.f32.mrf.mxu0
    %v848 = vadd.f32 %v599, %v847
    %v849 = vpop.f32.mrf.mxu0
    %v850 = vadd.f32 %v599, %v849
    %851 = vdwg.mxu0
    %852 = vmatpush.bf16.msra.mxu0 %v729
    %853 = vmatpush.bf16.msra.mxu0 %v727
    %854 = vmatpush.bf16.msra.mxu0 %v725
    %855 = vmatpush.bf16.msra.mxu0 %v723
    %856 = vmatpush.bf16.msra.mxu0 %v721
    %857 = vmatpush.bf16.msra.mxu0 %v719
    %858 = vmatpush.bf16.msra.mxu0 %v717
    %859 = vmatpush.bf16.msra.mxu0 %v715
    %860 = vmatmul.bf16.gmra.mxu0 %v534
    %v861 = vpop.f32.mrf.mxu0
    %v862 = vadd.f32 %v773, %v861
    %v863 = vpop.f32.mrf.mxu0
    %v864 = vadd.f32 %v775, %v863
    %865 = vmatmul.bf16.gmra.mxu0 %v536
    %v866 = vpop.f32.mrf.mxu0
    %v867 = vadd.f32 %v778, %v866
    %v868 = vpop.f32.mrf.mxu0
    %v869 = vadd.f32 %v780, %v868
    %870 = vmatmul.bf16.gmra.mxu0 %v538
    %v871 = vpop.f32.mrf.mxu0
    %v872 = vadd.f32 %v783, %v871
    %v873 = vpop.f32.mrf.mxu0
    %v874 = vadd.f32 %v785, %v873
    %875 = vmatmul.bf16.gmra.mxu0 %v540
    %v876 = vpop.f32.mrf.mxu0
    %v877 = vadd.f32 %v788, %v876
    %v878 = vpop.f32.mrf.mxu0
    %v879 = vadd.f32 %v790, %v878
    %880 = vmatmul.bf16.gmra.mxu0 %v542
    %v881 = vpop.f32.mrf.mxu0
    %v882 = vadd.f32 %v793, %v881
    %v883 = vpop.f32.mrf.mxu0
    %v884 = vadd.f32 %v795, %v883
    %885 = vmatmul.bf16.gmra.mxu0 %v544
    %v886 = vpop.f32.mrf.mxu0
    %v887 = vadd.f32 %v798, %v886
    %v888 = vpop.f32.mrf.mxu0
    %v889 = vadd.f32 %v800, %v888
    %890 = vmatmul.bf16.gmra.mxu0 %v546
    %v891 = vpop.f32.mrf.mxu0
    %v892 = vadd.f32 %v803, %v891
    %v893 = vpop.f32.mrf.mxu0
    %v894 = vadd.f32 %v805, %v893
    %895 = vmatmul.bf16.gmra.mxu0 %v548
    %v896 = vpop.f32.mrf.mxu0
    %v897 = vadd.f32 %v808, %v896
    %v898 = vpop.f32.mrf.mxu0
    %v899 = vadd.f32 %v810, %v898
    %900 = vmatmul.bf16.gmra.mxu0 %v550
    %v901 = vpop.f32.mrf.mxu0
    %v902 = vadd.f32 %v813, %v901
    %v903 = vpop.f32.mrf.mxu0
    %v904 = vadd.f32 %v815, %v903
    %905 = vmatmul.bf16.gmra.mxu0 %v552
    %v906 = vpop.f32.mrf.mxu0
    %v907 = vadd.f32 %v818, %v906
    %v908 = vpop.f32.mrf.mxu0
    %v909 = vadd.f32 %v820, %v908
    %910 = vmatmul.bf16.gmra.mxu0 %v554
    %v911 = vpop.f32.mrf.mxu0
    %v912 = vadd.f32 %v823, %v911
    %v913 = vpop.f32.mrf.mxu0
    %v914 = vadd.f32 %v825, %v913
    %915 = vmatmul.bf16.gmra.mxu0 %v556
    %v916 = vpop.f32.mrf.mxu0
    %v917 = vadd.f32 %v828, %v916
    %v918 = vpop.f32.mrf.mxu0
    %v919 = vadd.f32 %v830, %v918
    %920 = vmatmul.bf16.gmra.mxu0 %v558
    %v921 = vpop.f32.mrf.mxu0
    %v922 = vadd.f32 %v833, %v921
    %v923 = vpop.f32.mrf.mxu0
    %v924 = vadd.f32 %v835, %v923
    %925 = vmatmul.bf16.gmra.mxu0 %v560
    %v926 = vpop.f32.mrf.mxu0
    %v927 = vadd.f32 %v838, %v926
    %v928 = vpop.f32.mrf.mxu0
    %v929 = vadd.f32 %v840, %v928
    %930 = vmatmul.bf16.gmra.mxu0 %v562
    %v931 = vpop.f32.mrf.mxu0
    %v932 = vadd.f32 %v843, %v931
    %v933 = vpop.f32.mrf.mxu0
    %v934 = vadd.f32 %v845, %v933
    %935 = vmatmul.bf16.gmra.mxu0 %v564
    %v936 = vpop.f32.mrf.mxu0
    %v937 = vadd.f32 %v848, %v936
    %v938 = vpop.f32.mrf.mxu0
    %v939 = vadd.f32 %v850, %v938
    %940 = vdwg.mxu0
    %941 = vmatpush.bf16.msra.mxu0 %v714
    %942 = vmatpush.bf16.msra.mxu0 %v712
    %943 = vmatpush.bf16.msra.mxu0 %v710
    %944 = vmatpush.bf16.msra.mxu0 %v708
    %945 = vmatpush.bf16.msra.mxu0 %v706
    %946 = vmatpush.bf16.msra.mxu0 %v704
    %947 = vmatpush.bf16.msra.mxu0 %v702
    %948 = vmatpush.bf16.msra.mxu0 %v700
    %949 = vmatmul.bf16.gmra.mxu0 %v533
    %v950 = vpop.f32.mrf.mxu0
    %v951 = vadd.f32 %v600, %v950
    %v952 = vpop.f32.mrf.mxu0
    %v953 = vadd.f32 %v600, %v952
    %954 = vmatmul.bf16.gmra.mxu0 %v535
    %v955 = vpop.f32.mrf.mxu0
    %v956 = vadd.f32 %v600, %v955
    %v957 = vpop.f32.mrf.mxu0
    %v958 = vadd.f32 %v600, %v957
    %959 = vmatmul.bf16.gmra.mxu0 %v537
    %v960 = vpop.f32.mrf.mxu0
    %v961 = vadd.f32 %v600, %v960
    %v962 = vpop.f32.mrf.mxu0
    %v963 = vadd.f32 %v600, %v962
    %964 = vmatmul.bf16.gmra.mxu0 %v539
    %v965 = vpop.f32.mrf.mxu0
    %v966 = vadd.f32 %v600, %v965
    %v967 = vpop.f32.mrf.mxu0
    %v968 = vadd.f32 %v600, %v967
    %969 = vmatmul.bf16.gmra.mxu0 %v541
    %v970 = vpop.f32.mrf.mxu0
    %v971 = vadd.f32 %v600, %v970
    %v972 = vpop.f32.mrf.mxu0
    %v973 = vadd.f32 %v600, %v972
    %974 = vmatmul.bf16.gmra.mxu0 %v543
    %v975 = vpop.f32.mrf.mxu0
    %v976 = vadd.f32 %v600, %v975
    %v977 = vpop.f32.mrf.mxu0
    %v978 = vadd.f32 %v600, %v977
    %979 = vmatmul.bf16.gmra.mxu0 %v545
    %v980 = vpop.f32.mrf.mxu0
    %v981 = vadd.f32 %v600, %v980
    %v982 = vpop.f32.mrf.mxu0
    %v983 = vadd.f32 %v600, %v982
    %984 = vmatmul.bf16.gmra.mxu0 %v547
    %v985 = vpop.f32.mrf.mxu0
    %v986 = vadd.f32 %v600, %v985
    %v987 = vpop.f32.mrf.mxu0
    %v988 = vadd.f32 %v600, %v987
    %989 = vmatmul.bf16.gmra.mxu0 %v549
    %v990 = vpop.f32.mrf.mxu0
    %v991 = vadd.f32 %v600, %v990
    %v992 = vpop.f32.mrf.mxu0
    %v993 = vadd.f32 %v600, %v992
    %994 = vmatmul.bf16.gmra.mxu0 %v551
    %v995 = vpop.f32.mrf.mxu0
    %v996 = vadd.f32 %v600, %v995
    %v997 = vpop.f32.mrf.mxu0
    %v998 = vadd.f32 %v600, %v997
    %999 = vmatmul.bf16.gmra.mxu0 %v553
    %v1000 = vpop.f32.mrf.mxu0
    %v1001 = vadd.f32 %v600, %v1000
    %v1002 = vpop.f32.mrf.mxu0
    %v1003 = vadd.f32 %v600, %v1002
    %1004 = vmatmul.bf16.gmra.mxu0 %v555
    %v1005 = vpop.f32.mrf.mxu0
    %v1006 = vadd.f32 %v600, %v1005
    %v1007 = vpop.f32.mrf.mxu0
    %v1008 = vadd.f32 %v600, %v1007
    %1009 = vmatmul.bf16.gmra.mxu0 %v557
    %v1010 = vpop.f32.mrf.mxu0
    %v1011 = vadd.f32 %v600, %v1010
    %v1012 = vpop.f32.mrf.mxu0
    %v1013 = vadd.f32 %v600, %v1012
    %1014 = vmatmul.bf16.gmra.mxu0 %v559
    %v1015 = vpop.f32.mrf.mxu0
    %v1016 = vadd.f32 %v600, %v1015
    %v1017 = vpop.f32.mrf.mxu0
    %v1018 = vadd.f32 %v600, %v1017
    %1019 = vmatmul.bf16.gmra.mxu0 %v561
    %v1020 = vpop.f32.mrf.mxu0
    %v1021 = vadd.f32 %v600, %v1020
    %v1022 = vpop.f32.mrf.mxu0
    %v1023 = vadd.f32 %v600, %v1022
    %1024 = vmatmul.bf16.gmra.mxu0 %v563
    %v1025 = vpop.f32.mrf.mxu0
    %v1026 = vadd.f32 %v600, %v1025
    %v1027 = vpop.f32.mrf.mxu0
    %v1028 = vadd.f32 %v600, %v1027
    %1029 = vdwg.mxu0
    %1030 = vmatpush.bf16.msra.mxu0 %v730
    %1031 = vmatpush.bf16.msra.mxu0 %v728
    %1032 = vmatpush.bf16.msra.mxu0 %v726
    %1033 = vmatpush.bf16.msra.mxu0 %v724
    %1034 = vmatpush.bf16.msra.mxu0 %v722
    %1035 = vmatpush.bf16.msra.mxu0 %v720
    %1036 = vmatpush.bf16.msra.mxu0 %v718
    %1037 = vmatpush.bf16.msra.mxu0 %v716
    %1038 = vmatmul.bf16.gmra.mxu0 %v534
    %v1039 = vpop.f32.mrf.mxu0
    %v1040 = vadd.f32 %v951, %v1039
    %v1041 = vpop.f32.mrf.mxu0
    %v1042 = vadd.f32 %v953, %v1041
    %1043 = vmatmul.bf16.gmra.mxu0 %v536
    %v1044 = vpop.f32.mrf.mxu0
    %v1045 = vadd.f32 %v956, %v1044
    %v1046 = vpop.f32.mrf.mxu0
    %v1047 = vadd.f32 %v958, %v1046
    %1048 = vmatmul.bf16.gmra.mxu0 %v538
    %v1049 = vpop.f32.mrf.mxu0
    %v1050 = vadd.f32 %v961, %v1049
    %v1051 = vpop.f32.mrf.mxu0
    %v1052 = vadd.f32 %v963, %v1051
    %1053 = vmatmul.bf16.gmra.mxu0 %v540
    %v1054 = vpop.f32.mrf.mxu0
    %v1055 = vadd.f32 %v966, %v1054
    %v1056 = vpop.f32.mrf.mxu0
    %v1057 = vadd.f32 %v968, %v1056
    %1058 = vmatmul.bf16.gmra.mxu0 %v542
    %v1059 = vpop.f32.mrf.mxu0
    %v1060 = vadd.f32 %v971, %v1059
    %v1061 = vpop.f32.mrf.mxu0
    %v1062 = vadd.f32 %v973, %v1061
    %1063 = vmatmul.bf16.gmra.mxu0 %v544
    %v1064 = vpop.f32.mrf.mxu0
    %v1065 = vadd.f32 %v976, %v1064
    %v1066 = vpop.f32.mrf.mxu0
    %v1067 = vadd.f32 %v978, %v1066
    %1068 = vmatmul.bf16.gmra.mxu0 %v546
    %v1069 = vpop.f32.mrf.mxu0
    %v1070 = vadd.f32 %v981, %v1069
    %v1071 = vpop.f32.mrf.mxu0
    %v1072 = vadd.f32 %v983, %v1071
    %1073 = vmatmul.bf16.gmra.mxu0 %v548
    %v1074 = vpop.f32.mrf.mxu0
    %v1075 = vadd.f32 %v986, %v1074
    %v1076 = vpop.f32.mrf.mxu0
    %v1077 = vadd.f32 %v988, %v1076
    %1078 = vmatmul.bf16.gmra.mxu0 %v550
    %v1079 = vpop.f32.mrf.mxu0
    %v1080 = vadd.f32 %v991, %v1079
    %v1081 = vpop.f32.mrf.mxu0
    %v1082 = vadd.f32 %v993, %v1081
    %1083 = vmatmul.bf16.gmra.mxu0 %v552
    %v1084 = vpop.f32.mrf.mxu0
    %v1085 = vadd.f32 %v996, %v1084
    %v1086 = vpop.f32.mrf.mxu0
    %v1087 = vadd.f32 %v998, %v1086
    %1088 = vmatmul.bf16.gmra.mxu0 %v554
    %v1089 = vpop.f32.mrf.mxu0
    %v1090 = vadd.f32 %v1001, %v1089
    %v1091 = vpop.f32.mrf.mxu0
    %v1092 = vadd.f32 %v1003, %v1091
    %1093 = vmatmul.bf16.gmra.mxu0 %v556
    %v1094 = vpop.f32.mrf.mxu0
    %v1095 = vadd.f32 %v1006, %v1094
    %v1096 = vpop.f32.mrf.mxu0
    %v1097 = vadd.f32 %v1008, %v1096
    %1098 = vmatmul.bf16.gmra.mxu0 %v558
    %v1099 = vpop.f32.mrf.mxu0
    %v1100 = vadd.f32 %v1011, %v1099
    %v1101 = vpop.f32.mrf.mxu0
    %v1102 = vadd.f32 %v1013, %v1101
    %1103 = vmatmul.bf16.gmra.mxu0 %v560
    %v1104 = vpop.f32.mrf.mxu0
    %v1105 = vadd.f32 %v1016, %v1104
    %v1106 = vpop.f32.mrf.mxu0
    %v1107 = vadd.f32 %v1018, %v1106
    %1108 = vmatmul.bf16.gmra.mxu0 %v562
    %v1109 = vpop.f32.mrf.mxu0
    %v1110 = vadd.f32 %v1021, %v1109
    %v1111 = vpop.f32.mrf.mxu0
    %v1112 = vadd.f32 %v1023, %v1111
    %1113 = vmatmul.bf16.gmra.mxu0 %v564
    %v1114 = vpop.f32.mrf.mxu0
    %v1115 = vadd.f32 %v1026, %v1114
    %v1116 = vpop.f32.mrf.mxu0
    %v1117 = vadd.f32 %v1028, %v1116
    %1118 = vdwg.mxu0
    %v1119 = vpack.c.bf16 %v1040, %v862
    %v1120 = vpack.c.bf16 %v1042, %v864
    %v1121 = vpack.c.bf16 %v1045, %v867
    %v1122 = vpack.c.bf16 %v1047, %v869
    %v1123 = vpack.c.bf16 %v1050, %v872
    %v1124 = vpack.c.bf16 %v1052, %v874
    %v1125 = vpack.c.bf16 %v1055, %v877
    %v1126 = vpack.c.bf16 %v1057, %v879
    %v1127 = vpack.c.bf16 %v1060, %v882
    %v1128 = vpack.c.bf16 %v1062, %v884
    %v1129 = vpack.c.bf16 %v1065, %v887
    %v1130 = vpack.c.bf16 %v1067, %v889
    %v1131 = vpack.c.bf16 %v1070, %v892
    %v1132 = vpack.c.bf16 %v1072, %v894
    %v1133 = vpack.c.bf16 %v1075, %v897
    %v1134 = vpack.c.bf16 %v1077, %v899
    %v1135 = vpack.c.bf16 %v1080, %v902
    %v1136 = vpack.c.bf16 %v1082, %v904
    %v1137 = vpack.c.bf16 %v1085, %v907
    %v1138 = vpack.c.bf16 %v1087, %v909
    %v1139 = vpack.c.bf16 %v1090, %v912
    %v1140 = vpack.c.bf16 %v1092, %v914
    %v1141 = vpack.c.bf16 %v1095, %v917
    %v1142 = vpack.c.bf16 %v1097, %v919
    %v1143 = vpack.c.bf16 %v1100, %v922
    %v1144 = vpack.c.bf16 %v1102, %v924
    %v1145 = vpack.c.bf16 %v1105, %v927
    %v1146 = vpack.c.bf16 %v1107, %v929
    %v1147 = vpack.c.bf16 %v1110, %v932
    %v1148 = vpack.c.bf16 %v1112, %v934
    %v1149 = vpack.c.bf16 %v1115, %v937
    %v1150 = vpack.c.bf16 %v1117, %v939
    %v1151 = vunpack.c.l.bf16 %v1119
    %v1152 = vunpack.c.h.bf16 %v1119
    %v1153 = vunpack.c.l.bf16 %v1120
    %v1154 = vunpack.c.h.bf16 %v1120
    %v1155 = vunpack.c.l.bf16 %v1121
    %v1156 = vunpack.c.h.bf16 %v1121
    %v1157 = vunpack.c.l.bf16 %v1122
    %v1158 = vunpack.c.h.bf16 %v1122
    %v1159 = vunpack.c.l.bf16 %v1123
    %v1160 = vunpack.c.h.bf16 %v1123
    %v1161 = vunpack.c.l.bf16 %v1124
    %v1162 = vunpack.c.h.bf16 %v1124
    %v1163 = vunpack.c.l.bf16 %v1125
    %v1164 = vunpack.c.h.bf16 %v1125
    %v1165 = vunpack.c.l.bf16 %v1126
    %v1166 = vunpack.c.h.bf16 %v1126
    %v1167 = vunpack.c.l.bf16 %v1127
    %v1168 = vunpack.c.h.bf16 %v1127
    %v1169 = vunpack.c.l.bf16 %v1128
    %v1170 = vunpack.c.h.bf16 %v1128
    %v1171 = vunpack.c.l.bf16 %v1129
    %v1172 = vunpack.c.h.bf16 %v1129
    %v1173 = vunpack.c.l.bf16 %v1130
    %v1174 = vunpack.c.h.bf16 %v1130
    %v1175 = vunpack.c.l.bf16 %v1131
    %v1176 = vunpack.c.h.bf16 %v1131
    %v1177 = vunpack.c.l.bf16 %v1132
    %v1178 = vunpack.c.h.bf16 %v1132
    %v1179 = vunpack.c.l.bf16 %v1133
    %v1180 = vunpack.c.h.bf16 %v1133
    %v1181 = vunpack.c.l.bf16 %v1134
    %v1182 = vunpack.c.h.bf16 %v1134
    %v1183 = vunpack.c.l.bf16 %v1135
    %v1184 = vunpack.c.h.bf16 %v1135
    %v1185 = vunpack.c.l.bf16 %v1136
    %v1186 = vunpack.c.h.bf16 %v1136
    %v1187 = vunpack.c.l.bf16 %v1137
    %v1188 = vunpack.c.h.bf16 %v1137
    %v1189 = vunpack.c.l.bf16 %v1138
    %v1190 = vunpack.c.h.bf16 %v1138
    %v1191 = vunpack.c.l.bf16 %v1139
    %v1192 = vunpack.c.h.bf16 %v1139
    %v1193 = vunpack.c.l.bf16 %v1140
    %v1194 = vunpack.c.h.bf16 %v1140
    %v1195 = vunpack.c.l.bf16 %v1141
    %v1196 = vunpack.c.h.bf16 %v1141
    %v1197 = vunpack.c.l.bf16 %v1142
    %v1198 = vunpack.c.h.bf16 %v1142
    %v1199 = vunpack.c.l.bf16 %v1143
    %v1200 = vunpack.c.h.bf16 %v1143
    %v1201 = vunpack.c.l.bf16 %v1144
    %v1202 = vunpack.c.h.bf16 %v1144
    %v1203 = vunpack.c.l.bf16 %v1145
    %v1204 = vunpack.c.h.bf16 %v1145
    %v1205 = vunpack.c.l.bf16 %v1146
    %v1206 = vunpack.c.h.bf16 %v1146
    %v1207 = vunpack.c.l.bf16 %v1147
    %v1208 = vunpack.c.h.bf16 %v1147
    %v1209 = vunpack.c.l.bf16 %v1148
    %v1210 = vunpack.c.h.bf16 %v1148
    %v1211 = vunpack.c.l.bf16 %v1149
    %v1212 = vunpack.c.h.bf16 %v1149
    %v1213 = vunpack.c.l.bf16 %v1150
    %v1214 = vunpack.c.h.bf16 %v1150
    %v1215 = vmax.f32 %v1151, 0.0
    %v1216 = vmax.f32 %v1152, 0.0
    %v1217 = vmax.f32 %v1153, 0.0
    %v1218 = vmax.f32 %v1154, 0.0
    %v1219 = vmax.f32 %v1155, 0.0
    %v1220 = vmax.f32 %v1156, 0.0
    %v1221 = vmax.f32 %v1157, 0.0
    %v1222 = vmax.f32 %v1158, 0.0
    %v1223 = vmax.f32 %v1159, 0.0
    %v1224 = vmax.f32 %v1160, 0.0
    %v1225 = vmax.f32 %v1161, 0.0
    %v1226 = vmax.f32 %v1162, 0.0
    %v1227 = vmax.f32 %v1163, 0.0
    %v1228 = vmax.f32 %v1164, 0.0
    %v1229 = vmax.f32 %v1165, 0.0
    %v1230 = vmax.f32 %v1166, 0.0
    %v1231 = vmax.f32 %v1167, 0.0
    %v1232 = vmax.f32 %v1168, 0.0
    %v1233 = vmax.f32 %v1169, 0.0
    %v1234 = vmax.f32 %v1170, 0.0
    %v1235 = vmax.f32 %v1171, 0.0
    %v1236 = vmax.f32 %v1172, 0.0
    %v1237 = vmax.f32 %v1173, 0.0
    %v1238 = vmax.f32 %v1174, 0.0
    %v1239 = vmax.f32 %v1175, 0.0
    %v1240 = vmax.f32 %v1176, 0.0
    %v1241 = vmax.f32 %v1177, 0.0
    %v1242 = vmax.f32 %v1178, 0.0
    %v1243 = vmax.f32 %v1179, 0.0
    %v1244 = vmax.f32 %v1180, 0.0
    %v1245 = vmax.f32 %v1181, 0.0
    %v1246 = vmax.f32 %v1182, 0.0
    %v1247 = vmax.f32 %v1183, 0.0
    %v1248 = vmax.f32 %v1184, 0.0
    %v1249 = vmax.f32 %v1185, 0.0
    %v1250 = vmax.f32 %v1186, 0.0
    %v1251 = vmax.f32 %v1187, 0.0
    %v1252 = vmax.f32 %v1188, 0.0
    %v1253 = vmax.f32 %v1189, 0.0
    %v1254 = vmax.f32 %v1190, 0.0
    %v1255 = vmax.f32 %v1191, 0.0
    %v1256 = vmax.f32 %v1192, 0.0
    %v1257 = vmax.f32 %v1193, 0.0
    %v1258 = vmax.f32 %v1194, 0.0
    %v1259 = vmax.f32 %v1195, 0.0
    %v1260 = vmax.f32 %v1196, 0.0
    %v1261 = vmax.f32 %v1197, 0.0
    %v1262 = vmax.f32 %v1198, 0.0
    %v1263 = vmax.f32 %v1199, 0.0
    %v1264 = vmax.f32 %v1200, 0.0
    %v1265 = vmax.f32 %v1201, 0.0
    %v1266 = vmax.f32 %v1202, 0.0
    %v1267 = vmax.f32 %v1203, 0.0
    %v1268 = vmax.f32 %v1204, 0.0
    %v1269 = vmax.f32 %v1205, 0.0
    %v1270 = vmax.f32 %v1206, 0.0
    %v1271 = vmax.f32 %v1207, 0.0
    %v1272 = vmax.f32 %v1208, 0.0
    %v1273 = vmax.f32 %v1209, 0.0
    %v1274 = vmax.f32 %v1210, 0.0
    %v1275 = vmax.f32 %v1211, 0.0
    %v1276 = vmax.f32 %v1212, 0.0
    %v1277 = vmax.f32 %v1213, 0.0
    %v1278 = vmax.f32 %v1214, 0.0
    %v1279 = vpack.c.bf16 %v1217, %v1215
    %v1280 = vpack.c.bf16 %v1218, %v1216
    %v1281 = vpack.c.bf16 %v1221, %v1219
    %v1282 = vpack.c.bf16 %v1222, %v1220
    %v1283 = vpack.c.bf16 %v1225, %v1223
    %v1284 = vpack.c.bf16 %v1226, %v1224
    %v1285 = vpack.c.bf16 %v1229, %v1227
    %v1286 = vpack.c.bf16 %v1230, %v1228
    %v1287 = vpack.c.bf16 %v1233, %v1231
    %v1288 = vpack.c.bf16 %v1234, %v1232
    %v1289 = vpack.c.bf16 %v1237, %v1235
    %v1290 = vpack.c.bf16 %v1238, %v1236
    %v1291 = vpack.c.bf16 %v1241, %v1239
    %v1292 = vpack.c.bf16 %v1242, %v1240
    %v1293 = vpack.c.bf16 %v1245, %v1243
    %v1294 = vpack.c.bf16 %v1246, %v1244
    %v1295 = vpack.c.bf16 %v1249, %v1247
    %v1296 = vpack.c.bf16 %v1250, %v1248
    %v1297 = vpack.c.bf16 %v1253, %v1251
    %v1298 = vpack.c.bf16 %v1254, %v1252
    %v1299 = vpack.c.bf16 %v1257, %v1255
    %v1300 = vpack.c.bf16 %v1258, %v1256
    %v1301 = vpack.c.bf16 %v1261, %v1259
    %v1302 = vpack.c.bf16 %v1262, %v1260
    %v1303 = vpack.c.bf16 %v1265, %v1263
    %v1304 = vpack.c.bf16 %v1266, %v1264
    %v1305 = vpack.c.bf16 %v1269, %v1267
    %v1306 = vpack.c.bf16 %v1270, %v1268
    %v1307 = vpack.c.bf16 %v1273, %v1271
    %v1308 = vpack.c.bf16 %v1274, %v1272
    %v1309 = vpack.c.bf16 %v1277, %v1275
    %v1310 = vpack.c.bf16 %v1278, %v1276
    %v1311 = vld [vmem:[#allocation4] sm:$0xff]
    %v1312 = vld [vmem:[#allocation4 + $0x8] sm:$0xff]
    %v1313 = vld [vmem:[#allocation4 + $0x10] sm:$0xff]
    %v1314 = vld [vmem:[#allocation4 + $0x18] sm:$0xff]
    %v1315 = vld [vmem:[#allocation4 + $0x20] sm:$0xff]
    %v1316 = vld [vmem:[#allocation4 + $0x28] sm:$0xff]
    %v1317 = vld [vmem:[#allocation4 + $0x30] sm:$0xff]
    %v1318 = vld [vmem:[#allocation4 + $0x38] sm:$0xff]
    %v1319 = vld [vmem:[#allocation4 + $0x40] sm:$0xff]
    %v1320 = vld [vmem:[#allocation4 + $0x48] sm:$0xff]
    %v1321 = vld [vmem:[#allocation4 + $0x50] sm:$0xff]
    %v1322 = vld [vmem:[#allocation4 + $0x58] sm:$0xff]
    %v1323 = vld [vmem:[#allocation4 + $0x60] sm:$0xff]
    %v1324 = vld [vmem:[#allocation4 + $0x68] sm:$0xff]
    %v1325 = vld [vmem:[#allocation4 + $0x70] sm:$0xff]
    %v1326 = vld [vmem:[#allocation4 + $0x78] sm:$0xff]
    %v1327 = vld [vmem:[#allocation4 + $0x80] sm:$0xff]
    %v1328 = vld [vmem:[#allocation4 + $0x88] sm:$0xff]
    %v1329 = vld [vmem:[#allocation4 + $0x90] sm:$0xff]
    %v1330 = vld [vmem:[#allocation4 + $0x98] sm:$0xff]
    %v1331 = vld [vmem:[#allocation4 + $0xa0] sm:$0xff]
    %v1332 = vld [vmem:[#allocation4 + $0xa8] sm:$0xff]
    %v1333 = vld [vmem:[#allocation4 + $0xb0] sm:$0xff]
    %v1334 = vld [vmem:[#allocation4 + $0xb8] sm:$0xff]
    %v1335 = vld [vmem:[#allocation4 + $0xc0] sm:$0xff]
    %v1336 = vld [vmem:[#allocation4 + $0xc8] sm:$0xff]
    %v1337 = vld [vmem:[#allocation4 + $0xd0] sm:$0xff]
    %v1338 = vld [vmem:[#allocation4 + $0xd8] sm:$0xff]
    %v1339 = vld [vmem:[#allocation4 + $0xe0] sm:$0xff]
    %v1340 = vld [vmem:[#allocation4 + $0xe8] sm:$0xff]
    %v1341 = vld [vmem:[#allocation4 + $0xf0] sm:$0xff]
    %v1342 = vld [vmem:[#allocation4 + $0xf8] sm:$0xff]
    %v1343 = vld [vmem:[%s6] sm:$0x3]
    %v1345 = vperm.slane %v1343, 0
    %v1346 = vperm.slane %v1343, 1
    %v1381 = vunpack.c.l.b16 %v1311
    %v1382 = vunpack.c.h.b16 %v1311
    %v1383 = vunpack.c.l.b16 %v1312
    %v1384 = vunpack.c.h.b16 %v1312
    %v1385 = vunpack.c.l.b16 %v1313
    %v1386 = vunpack.c.h.b16 %v1313
    %v1387 = vunpack.c.l.b16 %v1314
    %v1388 = vunpack.c.h.b16 %v1314
    %v1389 = vunpack.c.l.b16 %v1315
    %v1390 = vunpack.c.h.b16 %v1315
    %v1391 = vunpack.c.l.b16 %v1316
    %v1392 = vunpack.c.h.b16 %v1316
    %v1393 = vunpack.c.l.b16 %v1317
    %v1394 = vunpack.c.h.b16 %v1317
    %v1395 = vunpack.c.l.b16 %v1318
    %v1396 = vunpack.c.h.b16 %v1318
    %v1397 = vunpack.c.l.b16 %v1319
    %v1398 = vunpack.c.h.b16 %v1319
    %v1399 = vunpack.c.l.b16 %v1320
    %v1400 = vunpack.c.h.b16 %v1320
    %v1401 = vunpack.c.l.b16 %v1321
    %v1402 = vunpack.c.h.b16 %v1321
    %v1403 = vunpack.c.l.b16 %v1322
    %v1404 = vunpack.c.h.b16 %v1322
    %v1405 = vunpack.c.l.b16 %v1323
    %v1406 = vunpack.c.h.b16 %v1323
    %v1407 = vunpack.c.l.b16 %v1324
    %v1408 = vunpack.c.h.b16 %v1324
    %v1409 = vunpack.c.l.b16 %v1325
    %v1410 = vunpack.c.h.b16 %v1325
    %v1411 = vunpack.c.l.b16 %v1326
    %v1412 = vunpack.c.h.b16 %v1326
    %v1413 = vunpack.c.l.b16 %v1327
    %v1414 = vunpack.c.h.b16 %v1327
    %v1415 = vunpack.c.l.b16 %v1328
    %v1416 = vunpack.c.h.b16 %v1328
    %v1417 = vunpack.c.l.b16 %v1329
    %v1418 = vunpack.c.h.b16 %v1329
    %v1419 = vunpack.c.l.b16 %v1330
    %v1420 = vunpack.c.h.b16 %v1330
    %v1421 = vunpack.c.l.b16 %v1331
    %v1422 = vunpack.c.h.b16 %v1331
    %v1423 = vunpack.c.l.b16 %v1332
    %v1424 = vunpack.c.h.b16 %v1332
    %v1425 = vunpack.c.l.b16 %v1333
    %v1426 = vunpack.c.h.b16 %v1333
    %v1427 = vunpack.c.l.b16 %v1334
    %v1428 = vunpack.c.h.b16 %v1334
    %v1429 = vunpack.c.l.b16 %v1335
    %v1430 = vunpack.c.h.b16 %v1335
    %v1431 = vunpack.c.l.b16 %v1336
    %v1432 = vunpack.c.h.b16 %v1336
    %v1433 = vunpack.c.l.b16 %v1337
    %v1434 = vunpack.c.h.b16 %v1337
    %v1435 = vunpack.c.l.b16 %v1338
    %v1436 = vunpack.c.h.b16 %v1338
    %v1437 = vunpack.c.l.b16 %v1339
    %v1438 = vunpack.c.h.b16 %v1339
    %v1439 = vunpack.c.l.b16 %v1340
    %v1440 = vunpack.c.h.b16 %v1340
    %v1441 = vunpack.c.l.b16 %v1341
    %v1442 = vunpack.c.h.b16 %v1341
    %v1443 = vunpack.c.l.b16 %v1342
    %v1444 = vunpack.c.h.b16 %v1342
    %v1445 = vpack.c.b16 %v1383, %v1381
    %v1446 = vpack.c.b16 %v1384, %v1382
    %v1447 = vpack.c.b16 %v1387, %v1385
    %v1448 = vpack.c.b16 %v1388, %v1386
    %v1449 = vpack.c.b16 %v1391, %v1389
    %v1450 = vpack.c.b16 %v1392, %v1390
    %v1451 = vpack.c.b16 %v1395, %v1393
    %v1452 = vpack.c.b16 %v1396, %v1394
    %v1453 = vpack.c.b16 %v1399, %v1397
    %v1454 = vpack.c.b16 %v1400, %v1398
    %v1455 = vpack.c.b16 %v1403, %v1401
    %v1456 = vpack.c.b16 %v1404, %v1402
    %v1457 = vpack.c.b16 %v1407, %v1405
    %v1458 = vpack.c.b16 %v1408, %v1406
    %v1459 = vpack.c.b16 %v1411, %v1409
    %v1460 = vpack.c.b16 %v1412, %v1410
    %v1461 = vpack.c.b16 %v1415, %v1413
    %v1462 = vpack.c.b16 %v1416, %v1414
    %v1463 = vpack.c.b16 %v1419, %v1417
    %v1464 = vpack.c.b16 %v1420, %v1418
    %v1465 = vpack.c.b16 %v1423, %v1421
    %v1466 = vpack.c.b16 %v1424, %v1422
    %v1467 = vpack.c.b16 %v1427, %v1425
    %v1468 = vpack.c.b16 %v1428, %v1426
    %v1469 = vpack.c.b16 %v1431, %v1429
    %v1470 = vpack.c.b16 %v1432, %v1430
    %v1471 = vpack.c.b16 %v1435, %v1433
    %v1472 = vpack.c.b16 %v1436, %v1434
    %v1473 = vpack.c.b16 %v1439, %v1437
    %v1474 = vpack.c.b16 %v1440, %v1438
    %v1475 = vpack.c.b16 %v1443, %v1441
    %v1476 = vpack.c.b16 %v1444, %v1442
    %1509 = vmatpush.bf16.msra.mxu0 %v1459
    %1510 = vmatpush.bf16.msra.mxu0 %v1457
    %1511 = vmatpush.bf16.msra.mxu0 %v1455
    %1512 = vmatpush.bf16.msra.mxu0 %v1453
    %1513 = vmatpush.bf16.msra.mxu0 %v1451
    %1514 = vmatpush.bf16.msra.mxu0 %v1449
    %1515 = vmatpush.bf16.msra.mxu0 %v1447
    %1516 = vmatpush.bf16.msra.mxu0 %v1445
    %1517 = vmatmul.bf16.gmra.mxu0 %v1279
    %v1518 = vpop.f32.mrf.mxu0
    %v1519 = vadd.f32 %v1345, %v1518
    %v1520 = vpop.f32.mrf.mxu0
    %v1521 = vadd.f32 %v1345, %v1520
    %1522 = vmatmul.bf16.gmra.mxu0 %v1281
    %v1523 = vpop.f32.mrf.mxu0
    %v1524 = vadd.f32 %v1345, %v1523
    %v1525 = vpop.f32.mrf.mxu0
    %v1526 = vadd.f32 %v1345, %v1525
    %1527 = vmatmul.bf16.gmra.mxu0 %v1283
    %v1528 = vpop.f32.mrf.mxu0
    %v1529 = vadd.f32 %v1345, %v1528
    %v1530 = vpop.f32.mrf.mxu0
    %v1531 = vadd.f32 %v1345, %v1530
    %1532 = vmatmul.bf16.gmra.mxu0 %v1285
    %v1533 = vpop.f32.mrf.mxu0
    %v1534 = vadd.f32 %v1345, %v1533
    %v1535 = vpop.f32.mrf.mxu0
    %v1536 = vadd.f32 %v1345, %v1535
    %1537 = vmatmul.bf16.gmra.mxu0 %v1287
    %v1538 = vpop.f32.mrf.mxu0
    %v1539 = vadd.f32 %v1345, %v1538
    %v1540 = vpop.f32.mrf.mxu0
    %v1541 = vadd.f32 %v1345, %v1540
    %1542 = vmatmul.bf16.gmra.mxu0 %v1289
    %v1543 = vpop.f32.mrf.mxu0
    %v1544 = vadd.f32 %v1345, %v1543
    %v1545 = vpop.f32.mrf.mxu0
    %v1546 = vadd.f32 %v1345, %v1545
    %1547 = vmatmul.bf16.gmra.mxu0 %v1291
    %v1548 = vpop.f32.mrf.mxu0
    %v1549 = vadd.f32 %v1345, %v1548
    %v1550 = vpop.f32.mrf.mxu0
    %v1551 = vadd.f32 %v1345, %v1550
    %1552 = vmatmul.bf16.gmra.mxu0 %v1293
    %v1553 = vpop.f32.mrf.mxu0
    %v1554 = vadd.f32 %v1345, %v1553
    %v1555 = vpop.f32.mrf.mxu0
    %v1556 = vadd.f32 %v1345, %v1555
    %1557 = vmatmul.bf16.gmra.mxu0 %v1295
    %v1558 = vpop.f32.mrf.mxu0
    %v1559 = vadd.f32 %v1345, %v1558
    %v1560 = vpop.f32.mrf.mxu0
    %v1561 = vadd.f32 %v1345, %v1560
    %1562 = vmatmul.bf16.gmra.mxu0 %v1297
    %v1563 = vpop.f32.mrf.mxu0
    %v1564 = vadd.f32 %v1345, %v1563
    %v1565 = vpop.f32.mrf.mxu0
    %v1566 = vadd.f32 %v1345, %v1565
    %1567 = vmatmul.bf16.gmra.mxu0 %v1299
    %v1568 = vpop.f32.mrf.mxu0
    %v1569 = vadd.f32 %v1345, %v1568
    %v1570 = vpop.f32.mrf.mxu0
    %v1571 = vadd.f32 %v1345, %v1570
    %1572 = vmatmul.bf16.gmra.mxu0 %v1301
    %v1573 = vpop.f32.mrf.mxu0
    %v1574 = vadd.f32 %v1345, %v1573
    %v1575 = vpop.f32.mrf.mxu0
    %v1576 = vadd.f32 %v1345, %v1575
    %1577 = vmatmul.bf16.gmra.mxu0 %v1303
    %v1578 = vpop.f32.mrf.mxu0
    %v1579 = vadd.f32 %v1345, %v1578
    %v1580 = vpop.f32.mrf.mxu0
    %v1581 = vadd.f32 %v1345, %v1580
    %1582 = vmatmul.bf16.gmra.mxu0 %v1305
    %v1583 = vpop.f32.mrf.mxu0
    %v1584 = vadd.f32 %v1345, %v1583
    %v1585 = vpop.f32.mrf.mxu0
    %v1586 = vadd.f32 %v1345, %v1585
    %1587 = vmatmul.bf16.gmra.mxu0 %v1307
    %v1588 = vpop.f32.mrf.mxu0
    %v1589 = vadd.f32 %v1345, %v1588
    %v1590 = vpop.f32.mrf.mxu0
    %v1591 = vadd.f32 %v1345, %v1590
    %1592 = vmatmul.bf16.gmra.mxu0 %v1309
    %v1593 = vpop.f32.mrf.mxu0
    %v1594 = vadd.f32 %v1345, %v1593
    %v1595 = vpop.f32.mrf.mxu0
    %v1596 = vadd.f32 %v1345, %v1595
    %1597 = vdwg.mxu0
    %1598 = vmatpush.bf16.msra.mxu0 %v1475
    %1599 = vmatpush.bf16.msra.mxu0 %v1473
    %1600 = vmatpush.bf16.msra.mxu0 %v1471
    %1601 = vmatpush.bf16.msra.mxu0 %v1469
    %1602 = vmatpush.bf16.msra.mxu0 %v1467
    %1603 = vmatpush.bf16.msra.mxu0 %v1465
    %1604 = vmatpush.bf16.msra.mxu0 %v1463
    %1605 = vmatpush.bf16.msra.mxu0 %v1461
    %1606 = vmatmul.bf16.gmra.mxu0 %v1280
    %v1607 = vpop.f32.mrf.mxu0
    %v1608 = vadd.f32 %v1519, %v1607
    %v1609 = vpop.f32.mrf.mxu0
    %v1610 = vadd.f32 %v1521, %v1609
    %1611 = vmatmul.bf16.gmra.mxu0 %v1282
    %v1612 = vpop.f32.mrf.mxu0
    %v1613 = vadd.f32 %v1524, %v1612
    %v1614 = vpop.f32.mrf.mxu0
    %v1615 = vadd.f32 %v1526, %v1614
    %1616 = vmatmul.bf16.gmra.mxu0 %v1284
    %v1617 = vpop.f32.mrf.mxu0
    %v1618 = vadd.f32 %v1529, %v1617
    %v1619 = vpop.f32.mrf.mxu0
    %v1620 = vadd.f32 %v1531, %v1619
    %1621 = vmatmul.bf16.gmra.mxu0 %v1286
    %v1622 = vpop.f32.mrf.mxu0
    %v1623 = vadd.f32 %v1534, %v1622
    %v1624 = vpop.f32.mrf.mxu0
    %v1625 = vadd.f32 %v1536, %v1624
    %1626 = vmatmul.bf16.gmra.mxu0 %v1288
    %v1627 = vpop.f32.mrf.mxu0
    %v1628 = vadd.f32 %v1539, %v1627
    %v1629 = vpop.f32.mrf.mxu0
    %v1630 = vadd.f32 %v1541, %v1629
    %1631 = vmatmul.bf16.gmra.mxu0 %v1290
    %v1632 = vpop.f32.mrf.mxu0
    %v1633 = vadd.f32 %v1544, %v1632
    %v1634 = vpop.f32.mrf.mxu0
    %v1635 = vadd.f32 %v1546, %v1634
    %1636 = vmatmul.bf16.gmra.mxu0 %v1292
    %v1637 = vpop.f32.mrf.mxu0
    %v1638 = vadd.f32 %v1549, %v1637
    %v1639 = vpop.f32.mrf.mxu0
    %v1640 = vadd.f32 %v1551, %v1639
    %1641 = vmatmul.bf16.gmra.mxu0 %v1294
    %v1642 = vpop.f32.mrf.mxu0
    %v1643 = vadd.f32 %v1554, %v1642
    %v1644 = vpop.f32.mrf.mxu0
    %v1645 = vadd.f32 %v1556, %v1644
    %1646 = vmatmul.bf16.gmra.mxu0 %v1296
    %v1647 = vpop.f32.mrf.mxu0
    %v1648 = vadd.f32 %v1559, %v1647
    %v1649 = vpop.f32.mrf.mxu0
    %v1650 = vadd.f32 %v1561, %v1649
    %1651 = vmatmul.bf16.gmra.mxu0 %v1298
    %v1652 = vpop.f32.mrf.mxu0
    %v1653 = vadd.f32 %v1564, %v1652
    %v1654 = vpop.f32.mrf.mxu0
    %v1655 = vadd.f32 %v1566, %v1654
    %1656 = vmatmul.bf16.gmra.mxu0 %v1300
    %v1657 = vpop.f32.mrf.mxu0
    %v1658 = vadd.f32 %v1569, %v1657
    %v1659 = vpop.f32.mrf.mxu0
    %v1660 = vadd.f32 %v1571, %v1659
    %1661 = vmatmul.bf16.gmra.mxu0 %v1302
    %v1662 = vpop.f32.mrf.mxu0
    %v1663 = vadd.f32 %v1574, %v1662
    %v1664 = vpop.f32.mrf.mxu0
    %v1665 = vadd.f32 %v1576, %v1664
    %1666 = vmatmul.bf16.gmra.mxu0 %v1304
    %v1667 = vpop.f32.mrf.mxu0
    %v1668 = vadd.f32 %v1579, %v1667
    %v1669 = vpop.f32.mrf.mxu0
    %v1670 = vadd.f32 %v1581, %v1669
    %1671 = vmatmul.bf16.gmra.mxu0 %v1306
    %v1672 = vpop.f32.mrf.mxu0
    %v1673 = vadd.f32 %v1584, %v1672
    %v1674 = vpop.f32.mrf.mxu0
    %v1675 = vadd.f32 %v1586, %v1674
    %1676 = vmatmul.bf16.gmra.mxu0 %v1308
    %v1677 = vpop.f32.mrf.mxu0
    %v1678 = vadd.f32 %v1589, %v1677
    %v1679 = vpop.f32.mrf.mxu0
    %v1680 = vadd.f32 %v1591, %v1679
    %1681 = vmatmul.bf16.gmra.mxu0 %v1310
    %v1682 = vpop.f32.mrf.mxu0
    %v1683 = vadd.f32 %v1594, %v1682
    %v1684 = vpop.f32.mrf.mxu0
    %v1685 = vadd.f32 %v1596, %v1684
    %1686 = vdwg.mxu0
    %1687 = vmatpush.bf16.msra.mxu0 %v1460
    %1688 = vmatpush.bf16.msra.mxu0 %v1458
    %1689 = vmatpush.bf16.msra.mxu0 %v1456
    %1690 = vmatpush.bf16.msra.mxu0 %v1454
    %1691 = vmatpush.bf16.msra.mxu0 %v1452
    %1692 = vmatpush.bf16.msra.mxu0 %v1450
    %1693 = vmatpush.bf16.msra.mxu0 %v1448
    %1694 = vmatpush.bf16.msra.mxu0 %v1446
    %1695 = vmatmul.bf16.gmra.mxu0 %v1279
    %v1696 = vpop.f32.mrf.mxu0
    %v1697 = vadd.f32 %v1346, %v1696
    %v1698 = vpop.f32.mrf.mxu0
    %v1699 = vadd.f32 %v1346, %v1698
    %1700 = vmatmul.bf16.gmra.mxu0 %v1281
    %v1701 = vpop.f32.mrf.mxu0
    %v1702 = vadd.f32 %v1346, %v1701
    %v1703 = vpop.f32.mrf.mxu0
    %v1704 = vadd.f32 %v1346, %v1703
    %1705 = vmatmul.bf16.gmra.mxu0 %v1283
    %v1706 = vpop.f32.mrf.mxu0
    %v1707 = vadd.f32 %v1346, %v1706
    %v1708 = vpop.f32.mrf.mxu0
    %v1709 = vadd.f32 %v1346, %v1708
    %1710 = vmatmul.bf16.gmra.mxu0 %v1285
    %v1711 = vpop.f32.mrf.mxu0
    %v1712 = vadd.f32 %v1346, %v1711
    %v1713 = vpop.f32.mrf.mxu0
    %v1714 = vadd.f32 %v1346, %v1713
    %1715 = vmatmul.bf16.gmra.mxu0 %v1287
    %v1716 = vpop.f32.mrf.mxu0
    %v1717 = vadd.f32 %v1346, %v1716
    %v1718 = vpop.f32.mrf.mxu0
    %v1719 = vadd.f32 %v1346, %v1718
    %1720 = vmatmul.bf16.gmra.mxu0 %v1289
    %v1721 = vpop.f32.mrf.mxu0
    %v1722 = vadd.f32 %v1346, %v1721
    %v1723 = vpop.f32.mrf.mxu0
    %v1724 = vadd.f32 %v1346, %v1723
    %1725 = vmatmul.bf16.gmra.mxu0 %v1291
    %v1726 = vpop.f32.mrf.mxu0
    %v1727 = vadd.f32 %v1346, %v1726
    %v1728 = vpop.f32.mrf.mxu0
    %v1729 = vadd.f32 %v1346, %v1728
    %1730 = vmatmul.bf16.gmra.mxu0 %v1293
    %v1731 = vpop.f32.mrf.mxu0
    %v1732 = vadd.f32 %v1346, %v1731
    %v1733 = vpop.f32.mrf.mxu0
    %v1734 = vadd.f32 %v1346, %v1733
    %1735 = vmatmul.bf16.gmra.mxu0 %v1295
    %v1736 = vpop.f32.mrf.mxu0
    %v1737 = vadd.f32 %v1346, %v1736
    %v1738 = vpop.f32.mrf.mxu0
    %v1739 = vadd.f32 %v1346, %v1738
    %1740 = vmatmul.bf16.gmra.mxu0 %v1297
    %v1741 = vpop.f32.mrf.mxu0
    %v1742 = vadd.f32 %v1346, %v1741
    %v1743 = vpop.f32.mrf.mxu0
    %v1744 = vadd.f32 %v1346, %v1743
    %1745 = vmatmul.bf16.gmra.mxu0 %v1299
    %v1746 = vpop.f32.mrf.mxu0
    %v1747 = vadd.f32 %v1346, %v1746
    %v1748 = vpop.f32.mrf.mxu0
    %v1749 = vadd.f32 %v1346, %v1748
    %1750 = vmatmul.bf16.gmra.mxu0 %v1301
    %v1751 = vpop.f32.mrf.mxu0
    %v1752 = vadd.f32 %v1346, %v1751
    %v1753 = vpop.f32.mrf.mxu0
    %v1754 = vadd.f32 %v1346, %v1753
    %1755 = vmatmul.bf16.gmra.mxu0 %v1303
    %v1756 = vpop.f32.mrf.mxu0
    %v1757 = vadd.f32 %v1346, %v1756
    %v1758 = vpop.f32.mrf.mxu0
    %v1759 = vadd.f32 %v1346, %v1758
    %1760 = vmatmul.bf16.gmra.mxu0 %v1305
    %v1761 = vpop.f32.mrf.mxu0
    %v1762 = vadd.f32 %v1346, %v1761
    %v1763 = vpop.f32.mrf.mxu0
    %v1764 = vadd.f32 %v1346, %v1763
    %1765 = vmatmul.bf16.gmra.mxu0 %v1307
    %v1766 = vpop.f32.mrf.mxu0
    %v1767 = vadd.f32 %v1346, %v1766
    %v1768 = vpop.f32.mrf.mxu0
    %v1769 = vadd.f32 %v1346, %v1768
    %1770 = vmatmul.bf16.gmra.mxu0 %v1309
    %v1771 = vpop.f32.mrf.mxu0
    %v1772 = vadd.f32 %v1346, %v1771
    %v1773 = vpop.f32.mrf.mxu0
    %v1774 = vadd.f32 %v1346, %v1773
    %1775 = vdwg.mxu0
    %1776 = vmatpush.bf16.msra.mxu0 %v1476
    %1777 = vmatpush.bf16.msra.mxu0 %v1474
    %1778 = vmatpush.bf16.msra.mxu0 %v1472
    %1779 = vmatpush.bf16.msra.mxu0 %v1470
    %1780 = vmatpush.bf16.msra.mxu0 %v1468
    %1781 = vmatpush.bf16.msra.mxu0 %v1466
    %1782 = vmatpush.bf16.msra.mxu0 %v1464
    %1783 = vmatpush.bf16.msra.mxu0 %v1462
    %1784 = vmatmul.bf16.gmra.mxu0 %v1280
    %v1785 = vpop.f32.mrf.mxu0
    %v1786 = vadd.f32 %v1697, %v1785
    %v1787 = vpop.f32.mrf.mxu0
    %v1788 = vadd.f32 %v1699, %v1787
    %1789 = vmatmul.bf16.gmra.mxu0 %v1282
    %v1790 = vpop.f32.mrf.mxu0
    %v1791 = vadd.f32 %v1702, %v1790
    %v1792 = vpop.f32.mrf.mxu0
    %v1793 = vadd.f32 %v1704, %v1792
    %1794 = vmatmul.bf16.gmra.mxu0 %v1284
    %v1795 = vpop.f32.mrf.mxu0
    %v1796 = vadd.f32 %v1707, %v1795
    %v1797 = vpop.f32.mrf.mxu0
    %v1798 = vadd.f32 %v1709, %v1797
    %1799 = vmatmul.bf16.gmra.mxu0 %v1286
    %v1800 = vpop.f32.mrf.mxu0
    %v1801 = vadd.f32 %v1712, %v1800
    %v1802 = vpop.f32.mrf.mxu0
    %v1803 = vadd.f32 %v1714, %v1802
    %1804 = vmatmul.bf16.gmra.mxu0 %v1288
    %v1805 = vpop.f32.mrf.mxu0
    %v1806 = vadd.f32 %v1717, %v1805
    %v1807 = vpop.f32.mrf.mxu0
    %v1808 = vadd.f32 %v1719, %v1807
    %1809 = vmatmul.bf16.gmra.mxu0 %v1290
    %v1810 = vpop.f32.mrf.mxu0
    %v1811 = vadd.f32 %v1722, %v1810
    %v1812 = vpop.f32.mrf.mxu0
    %v1813 = vadd.f32 %v1724, %v1812
    %1814 = vmatmul.bf16.gmra.mxu0 %v1292
    %v1815 = vpop.f32.mrf.mxu0
    %v1816 = vadd.f32 %v1727, %v1815
    %v1817 = vpop.f32.mrf.mxu0
    %v1818 = vadd.f32 %v1729, %v1817
    %1819 = vmatmul.bf16.gmra.mxu0 %v1294
    %v1820 = vpop.f32.mrf.mxu0
    %v1821 = vadd.f32 %v1732, %v1820
    %v1822 = vpop.f32.mrf.mxu0
    %v1823 = vadd.f32 %v1734, %v1822
    %1824 = vmatmul.bf16.gmra.mxu0 %v1296
    %v1825 = vpop.f32.mrf.mxu0
    %v1826 = vadd.f32 %v1737, %v1825
    %v1827 = vpop.f32.mrf.mxu0
    %v1828 = vadd.f32 %v1739, %v1827
    %1829 = vmatmul.bf16.gmra.mxu0 %v1298
    %v1830 = vpop.f32.mrf.mxu0
    %v1831 = vadd.f32 %v1742, %v1830
    %v1832 = vpop.f32.mrf.mxu0
    %v1833 = vadd.f32 %v1744, %v1832
    %1834 = vmatmul.bf16.gmra.mxu0 %v1300
    %v1835 = vpop.f32.mrf.mxu0
    %v1836 = vadd.f32 %v1747, %v1835
    %v1837 = vpop.f32.mrf.mxu0
    %v1838 = vadd.f32 %v1749, %v1837
    %1839 = vmatmul.bf16.gmra.mxu0 %v1302
    %v1840 = vpop.f32.mrf.mxu0
    %v1841 = vadd.f32 %v1752, %v1840
    %v1842 = vpop.f32.mrf.mxu0
    %v1843 = vadd.f32 %v1754, %v1842
    %1844 = vmatmul.bf16.gmra.mxu0 %v1304
    %v1845 = vpop.f32.mrf.mxu0
    %v1846 = vadd.f32 %v1757, %v1845
    %v1847 = vpop.f32.mrf.mxu0
    %v1848 = vadd.f32 %v1759, %v1847
    %1849 = vmatmul.bf16.gmra.mxu0 %v1306
    %v1850 = vpop.f32.mrf.mxu0
    %v1851 = vadd.f32 %v1762, %v1850
    %v1852 = vpop.f32.mrf.mxu0
    %v1853 = vadd.f32 %v1764, %v1852
    %1854 = vmatmul.bf16.gmra.mxu0 %v1308
    %v1855 = vpop.f32.mrf.mxu0
    %v1856 = vadd.f32 %v1767, %v1855
    %v1857 = vpop.f32.mrf.mxu0
    %v1858 = vadd.f32 %v1769, %v1857
    %1859 = vmatmul.bf16.gmra.mxu0 %v1310
    %v1860 = vpop.f32.mrf.mxu0
    %v1861 = vadd.f32 %v1772, %v1860
    %v1862 = vpop.f32.mrf.mxu0
    %v1863 = vadd.f32 %v1774, %v1862
    %1864 = vdwg.mxu0
    %v1865 = vpack.c.bf16 %v1786, %v1608
    %v1866 = vpack.c.bf16 %v1788, %v1610
    %v1867 = vpack.c.bf16 %v1791, %v1613
    %v1868 = vpack.c.bf16 %v1793, %v1615
    %v1869 = vpack.c.bf16 %v1796, %v1618
    %v1870 = vpack.c.bf16 %v1798, %v1620
    %v1871 = vpack.c.bf16 %v1801, %v1623
    %v1872 = vpack.c.bf16 %v1803, %v1625
    %v1873 = vpack.c.bf16 %v1806, %v1628
    %v1874 = vpack.c.bf16 %v1808, %v1630
    %v1875 = vpack.c.bf16 %v1811, %v1633
    %v1876 = vpack.c.bf16 %v1813, %v1635
    %v1877 = vpack.c.bf16 %v1816, %v1638
    %v1878 = vpack.c.bf16 %v1818, %v1640
    %v1879 = vpack.c.bf16 %v1821, %v1643
    %v1880 = vpack.c.bf16 %v1823, %v1645
    %v1881 = vpack.c.bf16 %v1826, %v1648
    %v1882 = vpack.c.bf16 %v1828, %v1650
    %v1883 = vpack.c.bf16 %v1831, %v1653
    %v1884 = vpack.c.bf16 %v1833, %v1655
    %v1885 = vpack.c.bf16 %v1836, %v1658
    %v1886 = vpack.c.bf16 %v1838, %v1660
    %v1887 = vpack.c.bf16 %v1841, %v1663
    %v1888 = vpack.c.bf16 %v1843, %v1665
    %v1889 = vpack.c.bf16 %v1846, %v1668
    %v1890 = vpack.c.bf16 %v1848, %v1670
    %v1891 = vpack.c.bf16 %v1851, %v1673
    %v1892 = vpack.c.bf16 %v1853, %v1675
    %v1893 = vpack.c.bf16 %v1856, %v1678
    %v1894 = vpack.c.bf16 %v1858, %v1680
    %v1895 = vpack.c.bf16 %v1861, %v1683
    %v1896 = vpack.c.bf16 %v1863, %v1685
    %v1897 = vunpack.c.l.bf16 %v1865
    %v1898 = vunpack.c.h.bf16 %v1865
    %v1899 = vunpack.c.l.bf16 %v1866
    %v1900 = vunpack.c.h.bf16 %v1866
    %v1901 = vunpack.c.l.bf16 %v1867
    %v1902 = vunpack.c.h.bf16 %v1867
    %v1903 = vunpack.c.l.bf16 %v1868
    %v1904 = vunpack.c.h.bf16 %v1868
    %v1905 = vunpack.c.l.bf16 %v1869
    %v1906 = vunpack.c.h.bf16 %v1869
    %v1907 = vunpack.c.l.bf16 %v1870
    %v1908 = vunpack.c.h.bf16 %v1870
    %v1909 = vunpack.c.l.bf16 %v1871
    %v1910 = vunpack.c.h.bf16 %v1871
    %v1911 = vunpack.c.l.bf16 %v1872
    %v1912 = vunpack.c.h.bf16 %v1872
    %v1913 = vunpack.c.l.bf16 %v1873
    %v1914 = vunpack.c.h.bf16 %v1873
    %v1915 = vunpack.c.l.bf16 %v1874
    %v1916 = vunpack.c.h.bf16 %v1874
    %v1917 = vunpack.c.l.bf16 %v1875
    %v1918 = vunpack.c.h.bf16 %v1875
    %v1919 = vunpack.c.l.bf16 %v1876
    %v1920 = vunpack.c.h.bf16 %v1876
    %v1921 = vunpack.c.l.bf16 %v1877
    %v1922 = vunpack.c.h.bf16 %v1877
    %v1923 = vunpack.c.l.bf16 %v1878
    %v1924 = vunpack.c.h.bf16 %v1878
    %v1925 = vunpack.c.l.bf16 %v1879
    %v1926 = vunpack.c.h.bf16 %v1879
    %v1927 = vunpack.c.l.bf16 %v1880
    %v1928 = vunpack.c.h.bf16 %v1880
    %v1929 = vunpack.c.l.bf16 %v1881
    %v1930 = vunpack.c.h.bf16 %v1881
    %v1931 = vunpack.c.l.bf16 %v1882
    %v1932 = vunpack.c.h.bf16 %v1882
    %v1933 = vunpack.c.l.bf16 %v1883
    %v1934 = vunpack.c.h.bf16 %v1883
    %v1935 = vunpack.c.l.bf16 %v1884
    %v1936 = vunpack.c.h.bf16 %v1884
    %v1937 = vunpack.c.l.bf16 %v1885
    %v1938 = vunpack.c.h.bf16 %v1885
    %v1939 = vunpack.c.l.bf16 %v1886
    %v1940 = vunpack.c.h.bf16 %v1886
    %v1941 = vunpack.c.l.bf16 %v1887
    %v1942 = vunpack.c.h.bf16 %v1887
    %v1943 = vunpack.c.l.bf16 %v1888
    %v1944 = vunpack.c.h.bf16 %v1888
    %v1945 = vunpack.c.l.bf16 %v1889
    %v1946 = vunpack.c.h.bf16 %v1889
    %v1947 = vunpack.c.l.bf16 %v1890
    %v1948 = vunpack.c.h.bf16 %v1890
    %v1949 = vunpack.c.l.bf16 %v1891
    %v1950 = vunpack.c.h.bf16 %v1891
    %v1951 = vunpack.c.l.bf16 %v1892
    %v1952 = vunpack.c.h.bf16 %v1892
    %v1953 = vunpack.c.l.bf16 %v1893
    %v1954 = vunpack.c.h.bf16 %v1893
    %v1955 = vunpack.c.l.bf16 %v1894
    %v1956 = vunpack.c.h.bf16 %v1894
    %v1957 = vunpack.c.l.bf16 %v1895
    %v1958 = vunpack.c.h.bf16 %v1895
    %v1959 = vunpack.c.l.bf16 %v1896
    %v1960 = vunpack.c.h.bf16 %v1896
    %v1961 = vmax.f32 %v1897, 0.0
    %v1962 = vmax.f32 %v1898, 0.0
    %v1963 = vmax.f32 %v1899, 0.0
    %v1964 = vmax.f32 %v1900, 0.0
    %v1965 = vmax.f32 %v1901, 0.0
    %v1966 = vmax.f32 %v1902, 0.0
    %v1967 = vmax.f32 %v1903, 0.0
    %v1968 = vmax.f32 %v1904, 0.0
    %v1969 = vmax.f32 %v1905, 0.0
    %v1970 = vmax.f32 %v1906, 0.0
    %v1971 = vmax.f32 %v1907, 0.0
    %v1972 = vmax.f32 %v1908, 0.0
    %v1973 = vmax.f32 %v1909, 0.0
    %v1974 = vmax.f32 %v1910, 0.0
    %v1975 = vmax.f32 %v1911, 0.0
    %v1976 = vmax.f32 %v1912, 0.0
    %v1977 = vmax.f32 %v1913, 0.0
    %v1978 = vmax.f32 %v1914, 0.0
    %v1979 = vmax.f32 %v1915, 0.0
    %v1980 = vmax.f32 %v1916, 0.0
    %v1981 = vmax.f32 %v1917, 0.0
    %v1982 = vmax.f32 %v1918, 0.0
    %v1983 = vmax.f32 %v1919, 0.0
    %v1984 = vmax.f32 %v1920, 0.0
    %v1985 = vmax.f32 %v1921, 0.0
    %v1986 = vmax.f32 %v1922, 0.0
    %v1987 = vmax.f32 %v1923, 0.0
    %v1988 = vmax.f32 %v1924, 0.0
    %v1989 = vmax.f32 %v1925, 0.0
    %v1990 = vmax.f32 %v1926, 0.0
    %v1991 = vmax.f32 %v1927, 0.0
    %v1992 = vmax.f32 %v1928, 0.0
    %v1993 = vmax.f32 %v1929, 0.0
    %v1994 = vmax.f32 %v1930, 0.0
    %v1995 = vmax.f32 %v1931, 0.0
    %v1996 = vmax.f32 %v1932, 0.0
    %v1997 = vmax.f32 %v1933, 0.0
    %v1998 = vmax.f32 %v1934, 0.0
    %v1999 = vmax.f32 %v1935, 0.0
    %v2000 = vmax.f32 %v1936, 0.0
    %v2001 = vmax.f32 %v1937, 0.0
    %v2002 = vmax.f32 %v1938, 0.0
    %v2003 = vmax.f32 %v1939, 0.0
    %v2004 = vmax.f32 %v1940, 0.0
    %v2005 = vmax.f32 %v1941, 0.0
    %v2006 = vmax.f32 %v1942, 0.0
    %v2007 = vmax.f32 %v1943, 0.0
    %v2008 = vmax.f32 %v1944, 0.0
    %v2009 = vmax.f32 %v1945, 0.0
    %v2010 = vmax.f32 %v1946, 0.0
    %v2011 = vmax.f32 %v1947, 0.0
    %v2012 = vmax.f32 %v1948, 0.0
    %v2013 = vmax.f32 %v1949, 0.0
    %v2014 = vmax.f32 %v1950, 0.0
    %v2015 = vmax.f32 %v1951, 0.0
    %v2016 = vmax.f32 %v1952, 0.0
    %v2017 = vmax.f32 %v1953, 0.0
    %v2018 = vmax.f32 %v1954, 0.0
    %v2019 = vmax.f32 %v1955, 0.0
    %v2020 = vmax.f32 %v1956, 0.0
    %v2021 = vmax.f32 %v1957, 0.0
    %v2022 = vmax.f32 %v1958, 0.0
    %v2023 = vmax.f32 %v1959, 0.0
    %v2024 = vmax.f32 %v1960, 0.0
    %v2025 = vpack.c.bf16 %v1963, %v1961
    %v2026 = vpack.c.bf16 %v1964, %v1962
    %v2027 = vpack.c.bf16 %v1967, %v1965
    %v2028 = vpack.c.bf16 %v1968, %v1966
    %v2029 = vpack.c.bf16 %v1971, %v1969
    %v2030 = vpack.c.bf16 %v1972, %v1970
    %v2031 = vpack.c.bf16 %v1975, %v1973
    %v2032 = vpack.c.bf16 %v1976, %v1974
    %v2033 = vpack.c.bf16 %v1979, %v1977
    %v2034 = vpack.c.bf16 %v1980, %v1978
    %v2035 = vpack.c.bf16 %v1983, %v1981
    %v2036 = vpack.c.bf16 %v1984, %v1982
    %v2037 = vpack.c.bf16 %v1987, %v1985
    %v2038 = vpack.c.bf16 %v1988, %v1986
    %v2039 = vpack.c.bf16 %v1991, %v1989
    %v2040 = vpack.c.bf16 %v1992, %v1990
    %v2041 = vpack.c.bf16 %v1995, %v1993
    %v2042 = vpack.c.bf16 %v1996, %v1994
    %v2043 = vpack.c.bf16 %v1999, %v1997
    %v2044 = vpack.c.bf16 %v2000, %v1998
    %v2045 = vpack.c.bf16 %v2003, %v2001
    %v2046 = vpack.c.bf16 %v2004, %v2002
    %v2047 = vpack.c.bf16 %v2007, %v2005
    %v2048 = vpack.c.bf16 %v2008, %v2006
    %v2049 = vpack.c.bf16 %v2011, %v2009
    %v2050 = vpack.c.bf16 %v2012, %v2010
    %v2051 = vpack.c.bf16 %v2015, %v2013
    %v2052 = vpack.c.bf16 %v2016, %v2014
    %v2053 = vpack.c.bf16 %v2019, %v2017
    %v2054 = vpack.c.bf16 %v2020, %v2018
    %v2055 = vpack.c.bf16 %v2023, %v2021
    %v2056 = vpack.c.bf16 %v2024, %v2022
    %v2057 = vld [vmem:[#allocation6] sm:$0xf]
    %v2058 = vld [vmem:[#allocation6 + $0x4] sm:$0xf]
    %v2059 = vld [vmem:[#allocation6 + $0x8] sm:$0xf]
    %v2060 = vld [vmem:[#allocation6 + $0xc] sm:$0xf]
    %v2061 = vld [vmem:[#allocation6 + $0x10] sm:$0xf]
    %v2062 = vld [vmem:[#allocation6 + $0x14] sm:$0xf]
    %v2063 = vld [vmem:[#allocation6 + $0x18] sm:$0xf]
    %v2064 = vld [vmem:[#allocation6 + $0x1c] sm:$0xf]
    %v2065 = vld [vmem:[#allocation6 + $0x20] sm:$0xf]
    %v2066 = vld [vmem:[#allocation6 + $0x24] sm:$0xf]
    %v2067 = vld [vmem:[#allocation6 + $0x28] sm:$0xf]
    %v2068 = vld [vmem:[#allocation6 + $0x2c] sm:$0xf]
    %v2069 = vld [vmem:[#allocation6 + $0x30] sm:$0xf]
    %v2070 = vld [vmem:[#allocation6 + $0x34] sm:$0xf]
    %v2071 = vld [vmem:[#allocation6 + $0x38] sm:$0xf]
    %v2072 = vld [vmem:[#allocation6 + $0x3c] sm:$0xf]
    %v2073 = vld [vmem:[#allocation6 + $0x40] sm:$0xf]
    %v2074 = vld [vmem:[#allocation6 + $0x44] sm:$0xf]
    %v2075 = vld [vmem:[#allocation6 + $0x48] sm:$0xf]
    %v2076 = vld [vmem:[#allocation6 + $0x4c] sm:$0xf]
    %v2077 = vld [vmem:[#allocation6 + $0x50] sm:$0xf]
    %v2078 = vld [vmem:[#allocation6 + $0x54] sm:$0xf]
    %v2079 = vld [vmem:[#allocation6 + $0x58] sm:$0xf]
    %v2080 = vld [vmem:[#allocation6 + $0x5c] sm:$0xf]
    %v2081 = vld [vmem:[#allocation6 + $0x60] sm:$0xf]
    %v2082 = vld [vmem:[#allocation6 + $0x64] sm:$0xf]
    %v2083 = vld [vmem:[#allocation6 + $0x68] sm:$0xf]
    %v2084 = vld [vmem:[#allocation6 + $0x6c] sm:$0xf]
    %v2085 = vld [vmem:[#allocation6 + $0x70] sm:$0xf]
    %v2086 = vld [vmem:[#allocation6 + $0x74] sm:$0xf]
    %v2087 = vld [vmem:[#allocation6 + $0x78] sm:$0xf]
    %v2088 = vld [vmem:[#allocation6 + $0x7c] sm:$0xf]
    %v2089 = vld [vmem:[%s8] sm:$0x1]
    %v2091 = vperm.slane %v2089, 0
    %v2125 = vunpack.c.l.b16 %v2057
    %v2126 = vunpack.c.l.b16 %v2058
    %v2127 = vunpack.c.l.b16 %v2059
    %v2128 = vunpack.c.l.b16 %v2060
    %v2129 = vunpack.c.l.b16 %v2061
    %v2130 = vunpack.c.l.b16 %v2062
    %v2131 = vunpack.c.l.b16 %v2063
    %v2132 = vunpack.c.l.b16 %v2064
    %v2133 = vunpack.c.l.b16 %v2065
    %v2134 = vunpack.c.l.b16 %v2066
    %v2135 = vunpack.c.l.b16 %v2067
    %v2136 = vunpack.c.l.b16 %v2068
    %v2137 = vunpack.c.l.b16 %v2069
    %v2138 = vunpack.c.l.b16 %v2070
    %v2139 = vunpack.c.l.b16 %v2071
    %v2140 = vunpack.c.l.b16 %v2072
    %v2141 = vunpack.c.l.b16 %v2073
    %v2142 = vunpack.c.l.b16 %v2074
    %v2143 = vunpack.c.l.b16 %v2075
    %v2144 = vunpack.c.l.b16 %v2076
    %v2145 = vunpack.c.l.b16 %v2077
    %v2146 = vunpack.c.l.b16 %v2078
    %v2147 = vunpack.c.l.b16 %v2079
    %v2148 = vunpack.c.l.b16 %v2080
    %v2149 = vunpack.c.l.b16 %v2081
    %v2150 = vunpack.c.l.b16 %v2082
    %v2151 = vunpack.c.l.b16 %v2083
    %v2152 = vunpack.c.l.b16 %v2084
    %v2153 = vunpack.c.l.b16 %v2085
    %v2154 = vunpack.c.l.b16 %v2086
    %v2155 = vunpack.c.l.b16 %v2087
    %v2156 = vunpack.c.l.b16 %v2088
    %v2157 = vpack.c.b16 %v2126, %v2125
    %v2158 = vpack.c.b16 %v2128, %v2127
    %v2159 = vpack.c.b16 %v2130, %v2129
    %v2160 = vpack.c.b16 %v2132, %v2131
    %v2161 = vpack.c.b16 %v2134, %v2133
    %v2162 = vpack.c.b16 %v2136, %v2135
    %v2163 = vpack.c.b16 %v2138, %v2137
    %v2164 = vpack.c.b16 %v2140, %v2139
    %v2165 = vpack.c.b16 %v2142, %v2141
    %v2166 = vpack.c.b16 %v2144, %v2143
    %v2167 = vpack.c.b16 %v2146, %v2145
    %v2168 = vpack.c.b16 %v2148, %v2147
    %v2169 = vpack.c.b16 %v2150, %v2149
    %v2170 = vpack.c.b16 %v2152, %v2151
    %v2171 = vpack.c.b16 %v2154, %v2153
    %v2172 = vpack.c.b16 %v2156, %v2155
    %2189 = vmatpush.bf16.msra.mxu0 %v2164
    %2190 = vmatpush.bf16.msra.mxu0 %v2163
    %2191 = vmatpush.bf16.msra.mxu0 %v2162
    %2192 = vmatpush.bf16.msra.mxu0 %v2161
    %2193 = vmatpush.bf16.msra.mxu0 %v2160
    %2194 = vmatpush.bf16.msra.mxu0 %v2159
    %2195 = vmatpush.bf16.msra.mxu0 %v2158
    %2196 = vmatpush.bf16.msra.mxu0 %v2157
    %2197 = vmatmul.bf16.gmra.mxu0 %v2025
    %v2198 = vpop.f32.mrf.mxu0
    %v2199 = vadd.f32 %v2091, %v2198
    %v2200 = vpop.f32.mrf.mxu0
    %v2201 = vadd.f32 %v2091, %v2200
    %2202 = vmatmul.bf16.gmra.mxu0 %v2027
    %v2203 = vpop.f32.mrf.mxu0
    %v2204 = vadd.f32 %v2091, %v2203
    %v2205 = vpop.f32.mrf.mxu0
    %v2206 = vadd.f32 %v2091, %v2205
    %2207 = vmatmul.bf16.gmra.mxu0 %v2029
    %v2208 = vpop.f32.mrf.mxu0
    %v2209 = vadd.f32 %v2091, %v2208
    %v2210 = vpop.f32.mrf.mxu0
    %v2211 = vadd.f32 %v2091, %v2210
    %2212 = vmatmul.bf16.gmra.mxu0 %v2031
    %v2213 = vpop.f32.mrf.mxu0
    %v2214 = vadd.f32 %v2091, %v2213
    %v2215 = vpop.f32.mrf.mxu0
    %v2216 = vadd.f32 %v2091, %v2215
    %2217 = vmatmul.bf16.gmra.mxu0 %v2033
    %v2218 = vpop.f32.mrf.mxu0
    %v2219 = vadd.f32 %v2091, %v2218
    %v2220 = vpop.f32.mrf.mxu0
    %v2221 = vadd.f32 %v2091, %v2220
    %2222 = vmatmul.bf16.gmra.mxu0 %v2035
    %v2223 = vpop.f32.mrf.mxu0
    %v2224 = vadd.f32 %v2091, %v2223
    %v2225 = vpop.f32.mrf.mxu0
    %v2226 = vadd.f32 %v2091, %v2225
    %2227 = vmatmul.bf16.gmra.mxu0 %v2037
    %v2228 = vpop.f32.mrf.mxu0
    %v2229 = vadd.f32 %v2091, %v2228
    %v2230 = vpop.f32.mrf.mxu0
    %v2231 = vadd.f32 %v2091, %v2230
    %2232 = vmatmul.bf16.gmra.mxu0 %v2039
    %v2233 = vpop.f32.mrf.mxu0
    %v2234 = vadd.f32 %v2091, %v2233
    %v2235 = vpop.f32.mrf.mxu0
    %v2236 = vadd.f32 %v2091, %v2235
    %2237 = vmatmul.bf16.gmra.mxu0 %v2041
    %v2238 = vpop.f32.mrf.mxu0
    %v2239 = vadd.f32 %v2091, %v2238
    %v2240 = vpop.f32.mrf.mxu0
    %v2241 = vadd.f32 %v2091, %v2240
    %2242 = vmatmul.bf16.gmra.mxu0 %v2043
    %v2243 = vpop.f32.mrf.mxu0
    %v2244 = vadd.f32 %v2091, %v2243
    %v2245 = vpop.f32.mrf.mxu0
    %v2246 = vadd.f32 %v2091, %v2245
    %2247 = vmatmul.bf16.gmra.mxu0 %v2045
    %v2248 = vpop.f32.mrf.mxu0
    %v2249 = vadd.f32 %v2091, %v2248
    %v2250 = vpop.f32.mrf.mxu0
    %v2251 = vadd.f32 %v2091, %v2250
    %2252 = vmatmul.bf16.gmra.mxu0 %v2047
    %v2253 = vpop.f32.mrf.mxu0
    %v2254 = vadd.f32 %v2091, %v2253
    %v2255 = vpop.f32.mrf.mxu0
    %v2256 = vadd.f32 %v2091, %v2255
    %2257 = vmatmul.bf16.gmra.mxu0 %v2049
    %v2258 = vpop.f32.mrf.mxu0
    %v2259 = vadd.f32 %v2091, %v2258
    %v2260 = vpop.f32.mrf.mxu0
    %v2261 = vadd.f32 %v2091, %v2260
    %2262 = vmatmul.bf16.gmra.mxu0 %v2051
    %v2263 = vpop.f32.mrf.mxu0
    %v2264 = vadd.f32 %v2091, %v2263
    %v2265 = vpop.f32.mrf.mxu0
    %v2266 = vadd.f32 %v2091, %v2265
    %2267 = vmatmul.bf16.gmra.mxu0 %v2053
    %v2268 = vpop.f32.mrf.mxu0
    %v2269 = vadd.f32 %v2091, %v2268
    %v2270 = vpop.f32.mrf.mxu0
    %v2271 = vadd.f32 %v2091, %v2270
    %2272 = vmatmul.bf16.gmra.mxu0 %v2055
    %v2273 = vpop.f32.mrf.mxu0
    %v2274 = vadd.f32 %v2091, %v2273
    %v2275 = vpop.f32.mrf.mxu0
    %v2276 = vadd.f32 %v2091, %v2275
    %2277 = vdwg.mxu0
    %2278 = vmatpush.bf16.msra.mxu0 %v2172
    %2279 = vmatpush.bf16.msra.mxu0 %v2171
    %2280 = vmatpush.bf16.msra.mxu0 %v2170
    %2281 = vmatpush.bf16.msra.mxu0 %v2169
    %2282 = vmatpush.bf16.msra.mxu0 %v2168
    %2283 = vmatpush.bf16.msra.mxu0 %v2167
    %2284 = vmatpush.bf16.msra.mxu0 %v2166
    %2285 = vmatpush.bf16.msra.mxu0 %v2165
    %2286 = vmatmul.bf16.gmra.mxu0 %v2026
    %v2287 = vpop.f32.mrf.mxu0
    %v2288 = vadd.f32 %v2199, %v2287
    %v2289 = vpop.f32.mrf.mxu0
    %v2290 = vadd.f32 %v2201, %v2289
    %2291 = vmatmul.bf16.gmra.mxu0 %v2028
    %v2292 = vpop.f32.mrf.mxu0
    %v2293 = vadd.f32 %v2204, %v2292
    %v2294 = vpop.f32.mrf.mxu0
    %v2295 = vadd.f32 %v2206, %v2294
    %2296 = vmatmul.bf16.gmra.mxu0 %v2030
    %v2297 = vpop.f32.mrf.mxu0
    %v2298 = vadd.f32 %v2209, %v2297
    %v2299 = vpop.f32.mrf.mxu0
    %v2300 = vadd.f32 %v2211, %v2299
    %2301 = vmatmul.bf16.gmra.mxu0 %v2032
    %v2302 = vpop.f32.mrf.mxu0
    %v2303 = vadd.f32 %v2214, %v2302
    %v2304 = vpop.f32.mrf.mxu0
    %v2305 = vadd.f32 %v2216, %v2304
    %2306 = vmatmul.bf16.gmra.mxu0 %v2034
    %v2307 = vpop.f32.mrf.mxu0
    %v2308 = vadd.f32 %v2219, %v2307
    %v2309 = vpop.f32.mrf.mxu0
    %v2310 = vadd.f32 %v2221, %v2309
    %2311 = vmatmul.bf16.gmra.mxu0 %v2036
    %v2312 = vpop.f32.mrf.mxu0
    %v2313 = vadd.f32 %v2224, %v2312
    %v2314 = vpop.f32.mrf.mxu0
    %v2315 = vadd.f32 %v2226, %v2314
    %2316 = vmatmul.bf16.gmra.mxu0 %v2038
    %v2317 = vpop.f32.mrf.mxu0
    %v2318 = vadd.f32 %v2229, %v2317
    %v2319 = vpop.f32.mrf.mxu0
    %v2320 = vadd.f32 %v2231, %v2319
    %2321 = vmatmul.bf16.gmra.mxu0 %v2040
    %v2322 = vpop.f32.mrf.mxu0
    %v2323 = vadd.f32 %v2234, %v2322
    %v2324 = vpop.f32.mrf.mxu0
    %v2325 = vadd.f32 %v2236, %v2324
    %2326 = vmatmul.bf16.gmra.mxu0 %v2042
    %v2327 = vpop.f32.mrf.mxu0
    %v2328 = vadd.f32 %v2239, %v2327
    %v2329 = vpop.f32.mrf.mxu0
    %v2330 = vadd.f32 %v2241, %v2329
    %2331 = vmatmul.bf16.gmra.mxu0 %v2044
    %v2332 = vpop.f32.mrf.mxu0
    %v2333 = vadd.f32 %v2244, %v2332
    %v2334 = vpop.f32.mrf.mxu0
    %v2335 = vadd.f32 %v2246, %v2334
    %2336 = vmatmul.bf16.gmra.mxu0 %v2046
    %v2337 = vpop.f32.mrf.mxu0
    %v2338 = vadd.f32 %v2249, %v2337
    %v2339 = vpop.f32.mrf.mxu0
    %v2340 = vadd.f32 %v2251, %v2339
    %2341 = vmatmul.bf16.gmra.mxu0 %v2048
    %v2342 = vpop.f32.mrf.mxu0
    %v2343 = vadd.f32 %v2254, %v2342
    %v2344 = vpop.f32.mrf.mxu0
    %v2345 = vadd.f32 %v2256, %v2344
    %2346 = vmatmul.bf16.gmra.mxu0 %v2050
    %v2347 = vpop.f32.mrf.mxu0
    %v2348 = vadd.f32 %v2259, %v2347
    %v2349 = vpop.f32.mrf.mxu0
    %v2350 = vadd.f32 %v2261, %v2349
    %2351 = vmatmul.bf16.gmra.mxu0 %v2052
    %v2352 = vpop.f32.mrf.mxu0
    %v2353 = vadd.f32 %v2264, %v2352
    %v2354 = vpop.f32.mrf.mxu0
    %v2355 = vadd.f32 %v2266, %v2354
    %2356 = vmatmul.bf16.gmra.mxu0 %v2054
    %v2357 = vpop.f32.mrf.mxu0
    %v2358 = vadd.f32 %v2269, %v2357
    %v2359 = vpop.f32.mrf.mxu0
    %v2360 = vadd.f32 %v2271, %v2359
    %2361 = vmatmul.bf16.gmra.mxu0 %v2056
    %v2362 = vpop.f32.mrf.mxu0
    %v2363 = vadd.f32 %v2274, %v2362
    %v2364 = vpop.f32.mrf.mxu0
    %v2365 = vadd.f32 %v2276, %v2364
    %2366 = vdwg.mxu0
    %v2367 = vmul.f32 %v2288, %v2288
    %v2368 = vmul.f32 %v2290, %v2290
    %v2369 = vmul.f32 %v2293, %v2293
    %v2370 = vmul.f32 %v2295, %v2295
    %v2371 = vmul.f32 %v2298, %v2298
    %v2372 = vmul.f32 %v2300, %v2300
    %v2373 = vmul.f32 %v2303, %v2303
    %v2374 = vmul.f32 %v2305, %v2305
    %v2375 = vmul.f32 %v2308, %v2308
    %v2376 = vmul.f32 %v2310, %v2310
    %v2377 = vmul.f32 %v2313, %v2313
    %v2378 = vmul.f32 %v2315, %v2315
    %v2379 = vmul.f32 %v2318, %v2318
    %v2380 = vmul.f32 %v2320, %v2320
    %v2381 = vmul.f32 %v2323, %v2323
    %v2382 = vmul.f32 %v2325, %v2325
    %v2383 = vmul.f32 %v2328, %v2328
    %v2384 = vmul.f32 %v2330, %v2330
    %v2385 = vmul.f32 %v2333, %v2333
    %v2386 = vmul.f32 %v2335, %v2335
    %v2387 = vmul.f32 %v2338, %v2338
    %v2388 = vmul.f32 %v2340, %v2340
    %v2389 = vmul.f32 %v2343, %v2343
    %v2390 = vmul.f32 %v2345, %v2345
    %v2391 = vmul.f32 %v2348, %v2348
    %v2392 = vmul.f32 %v2350, %v2350
    %v2393 = vmul.f32 %v2353, %v2353
    %v2394 = vmul.f32 %v2355, %v2355
    %v2395 = vmul.f32 %v2358, %v2358
    %v2396 = vmul.f32 %v2360, %v2360
    %v2397 = vmul.f32 %v2363, %v2363
    %v2398 = vmul.f32 %v2365, %v2365
    %v2399 = vadd.f32 %v2367, 1.0
    %v2400 = vadd.f32 %v2368, 1.0
    %v2401 = vadd.f32 %v2369, 1.0
    %v2402 = vadd.f32 %v2370, 1.0
    %v2403 = vadd.f32 %v2371, 1.0
    %v2404 = vadd.f32 %v2372, 1.0
    %v2405 = vadd.f32 %v2373, 1.0
    %v2406 = vadd.f32 %v2374, 1.0
    %v2407 = vadd.f32 %v2375, 1.0
    %v2408 = vadd.f32 %v2376, 1.0
    %v2409 = vadd.f32 %v2377, 1.0
    %v2410 = vadd.f32 %v2378, 1.0
    %v2411 = vadd.f32 %v2379, 1.0
    %v2412 = vadd.f32 %v2380, 1.0
    %v2413 = vadd.f32 %v2381, 1.0
    %v2414 = vadd.f32 %v2382, 1.0
    %v2415 = vadd.f32 %v2383, 1.0
    %v2416 = vadd.f32 %v2384, 1.0
    %v2417 = vadd.f32 %v2385, 1.0
    %v2418 = vadd.f32 %v2386, 1.0
    %v2419 = vadd.f32 %v2387, 1.0
    %v2420 = vadd.f32 %v2388, 1.0
    %v2421 = vadd.f32 %v2389, 1.0
    %v2422 = vadd.f32 %v2390, 1.0
    %v2423 = vadd.f32 %v2391, 1.0
    %v2424 = vadd.f32 %v2392, 1.0
    %v2425 = vadd.f32 %v2393, 1.0
    %v2426 = vadd.f32 %v2394, 1.0
    %v2427 = vadd.f32 %v2395, 1.0
    %v2428 = vadd.f32 %v2396, 1.0
    %v2429 = vadd.f32 %v2397, 1.0
    %v2430 = vadd.f32 %v2398, 1.0
    %v2431 = vpack.c.bf16 %v2399, %v2399
    %v2432 = vpack.c.bf16 %v2400, %v2400
    %v2433 = vpack.c.bf16 %v2401, %v2401
    %v2434 = vpack.c.bf16 %v2402, %v2402
    %v2435 = vpack.c.bf16 %v2403, %v2403
    %v2436 = vpack.c.bf16 %v2404, %v2404
    %v2437 = vpack.c.bf16 %v2405, %v2405
    %v2438 = vpack.c.bf16 %v2406, %v2406
    %v2439 = vpack.c.bf16 %v2407, %v2407
    %v2440 = vpack.c.bf16 %v2408, %v2408
    %v2441 = vpack.c.bf16 %v2409, %v2409
    %v2442 = vpack.c.bf16 %v2410, %v2410
    %v2443 = vpack.c.bf16 %v2411, %v2411
    %v2444 = vpack.c.bf16 %v2412, %v2412
    %v2445 = vpack.c.bf16 %v2413, %v2413
    %v2446 = vpack.c.bf16 %v2414, %v2414
    %v2447 = vpack.c.bf16 %v2415, %v2415
    %v2448 = vpack.c.bf16 %v2416, %v2416
    %v2449 = vpack.c.bf16 %v2417, %v2417
    %v2450 = vpack.c.bf16 %v2418, %v2418
    %v2451 = vpack.c.bf16 %v2419, %v2419
    %v2452 = vpack.c.bf16 %v2420, %v2420
    %v2453 = vpack.c.bf16 %v2421, %v2421
    %v2454 = vpack.c.bf16 %v2422, %v2422
    %v2455 = vpack.c.bf16 %v2423, %v2423
    %v2456 = vpack.c.bf16 %v2424, %v2424
    %v2457 = vpack.c.bf16 %v2425, %v2425
    %v2458 = vpack.c.bf16 %v2426, %v2426
    %v2459 = vpack.c.bf16 %v2427, %v2427
    %v2460 = vpack.c.bf16 %v2428, %v2428
    %v2461 = vpack.c.bf16 %v2429, %v2429
    %v2462 = vpack.c.bf16 %v2430, %v2430
    %2463 = vst [vmem:[%s9] sm:$0xf] %v2431
    %2464 = vst [vmem:[%s9 + $0x4] sm:$0xf] %v2432
    %2465 = vst [vmem:[%s9 + $0x8] sm:$0xf] %v2433
    %2466 = vst [vmem:[%s9 + $0xc] sm:$0xf] %v2434
    %2467 = vst [vmem:[%s9 + $0x10] sm:$0xf] %v2435
    %2468 = vst [vmem:[%s9 + $0x14] sm:$0xf] %v2436
    %2469 = vst [vmem:[%s9 + $0x18] sm:$0xf] %v2437
    %2470 = vst [vmem:[%s9 + $0x1c] sm:$0xf] %v2438
    %2471 = vst [vmem:[%s9 + $0x20] sm:$0xf] %v2439
    %2472 = vst [vmem:[%s9 + $0x24] sm:$0xf] %v2440
    %2473 = vst [vmem:[%s9 + $0x28] sm:$0xf] %v2441
    %2474 = vst [vmem:[%s9 + $0x2c] sm:$0xf] %v2442
    %2475 = vst [vmem:[%s9 + $0x30] sm:$0xf] %v2443
    %2476 = vst [vmem:[%s9 + $0x34] sm:$0xf] %v2444
    %2477 = vst [vmem:[%s9 + $0x38] sm:$0xf] %v2445
    %2478 = vst [vmem:[%s9 + $0x3c] sm:$0xf] %v2446
    %2479 = vst [vmem:[%s9 + $0x40] sm:$0xf] %v2447
    %2480 = vst [vmem:[%s9 + $0x44] sm:$0xf] %v2448
    %2481 = vst [vmem:[%s9 + $0x48] sm:$0xf] %v2449
    %2482 = vst [vmem:[%s9 + $0x4c] sm:$0xf] %v2450
    %2483 = vst [vmem:[%s9 + $0x50] sm:$0xf] %v2451
    %2484 = vst [vmem:[%s9 + $0x54] sm:$0xf] %v2452
    %2485 = vst [vmem:[%s9 + $0x58] sm:$0xf] %v2453
    %2486 = vst [vmem:[%s9 + $0x5c] sm:$0xf] %v2454
    %2487 = vst [vmem:[%s9 + $0x60] sm:$0xf] %v2455
    %2488 = vst [vmem:[%s9 + $0x64] sm:$0xf] %v2456
    %2489 = vst [vmem:[%s9 + $0x68] sm:$0xf] %v2457
    %2490 = vst [vmem:[%s9 + $0x6c] sm:$0xf] %v2458
    %2491 = vst [vmem:[%s9 + $0x70] sm:$0xf] %v2459
    %2492 = vst [vmem:[%s9 + $0x74] sm:$0xf] %v2460
    %2493 = vst [vmem:[%s9 + $0x78] sm:$0xf] %v2461
    %2494 = vst [vmem:[%s9 + $0x7c] sm:$0xf] %v2462
    // Predicated region
    $region50: #{ggd_risk_field_forward.1} parent=1 // pred_check
      _
    $region51: #{ggd_risk_field_forward.1} parent=1 // pred_check_branch
      %2496 = sbr.rel (0) target = $region53
    $region52: #{ggd_risk_field_forward.1} parent=1 // pred_region
      _
    $region53: #{ggd_risk_field_forward.1} parent=1 // pred_fallthru
      _
    // Predicated region
    $region54: #{ggd_risk_field_forward.1} parent=1 // pred_check
      _
    $region55: #{ggd_risk_field_forward.1} parent=1 // pred_check_branch
      %2498 = sbr.rel (0) target = $region57
    $region56: #{ggd_risk_field_forward.1} parent=1 // pred_region
      _
    $region57: #{ggd_risk_field_forward.1} parent=1 // pred_fallthru
      _
    %2499 = vsyncpa [#allocation3], 1
    %2500 = vsyncpa [#allocation5], 1

</llo_original>
